<compile_context>
chip_gen: v5e
topology: v5e:2x2
jax: 0.10.0
libtpu: 0.0.40
codegen_flags: <defaults>
</compile_context>

<pallas_src>
import functools

import jax
import jax.numpy as jnp
from jax.experimental import pallas as pl
from jax.experimental.pallas import tpu as pltpu

EPS = 1e-5
NEG_SLOPE = 0.2

_VMEM_BUDGET = 32 * 1024 * 1024       # per-step buffer budget used for tiling
_VMEM_LIMIT = 48 * 1024 * 1024        # scoped-VMEM limit (safe on v5e/v6e/v7x)
_PASS2_BUDGET = 24 * 1024 * 1024


def _round_up(x: int, m: int) -> int:
    return (x + m - 1) // m * m


# ---------------------------------------------------------------------------
# Pass 1: K-tiled conv matmul + per-M-tile partial BN statistics.
#   grid = (m_tile [parallel], k_tile [arbitrary])
# ---------------------------------------------------------------------------
def _conv_stats_kernel(p_ref, w_ref, y_ref, stats_ref, acc_ref):
    k = pl.program_id(1)

    @pl.when(k == 0)
    def _():
        acc_ref[...] = jnp.zeros_like(acc_ref)

    # (TM, TK) bf16 @ (TK, Coutp) bf16 -> f32 accumulation on the MXU.
    acc_ref[...] += jnp.dot(p_ref[...], w_ref[...],
                            preferred_element_type=jnp.float32)

    @pl.when(k == pl.num_programs(1) - 1)
    def _():
        y = acc_ref[...]
        # bf16 writeback of the large intermediate; stats stay f32.
        y_ref[...] = y.astype(y_ref.dtype)
        s1 = jnp.sum(y, axis=0)          # (Coutp,)
        s2 = jnp.sum(y * y, axis=0)      # (Coutp,)
        stats_ref[...] = jnp.stack([s1, s2], axis=0)[None]   # (1, 2, Coutp)


# ---------------------------------------------------------------------------
# Pass 2: fused affine normalize (f32 FMA) + LeakyReLU.  Pure HBM streaming.
# ---------------------------------------------------------------------------
def _bn_act_kernel(y_ref, scale_ref, shift_ref, o_ref):
    z = y_ref[...].astype(jnp.float32) * scale_ref[...] + shift_ref[...]
    o_ref[...] = jnp.where(z >= 0, z, NEG_SLOPE * z)


def _pass1_footprint(tm: int, tk: int, coutp: int) -> int:
    return (2 * tm * tk * 2          # patches block, bf16, double buffered
            + 2 * tk * coutp * 2     # weight block, bf16, double buffered
            + 2 * tm * coutp * 2     # y output block, bf16, double buffered
            + tm * coutp * 4         # f32 accumulator scratch
            + 2 * 2 * coutp * 4)     # stats block


@functools.partial(jax.jit, static_argnames=("stride",))
def disc_layer_nhwc(x_nhwc, w, b, gamma, beta, *, stride: int):
    """x_nhwc: (N, H, W, Cin) f32.  w: (Cout, Cin, 3, 3).  Returns NHWC f32.

    `b` (conv bias) is accepted for interface parity with nn.Conv2d but is
    mathematically cancelled by training-mode BatchNorm2d, so it is unused.
    """
    del b  # exactly cancelled by the BN mean subtraction
    N, H, W, Cin = x_nhwc.shape
    Cout = w.shape[0]
    KH = KW = 3
    H_out = (H + 2 - KH) // stride + 1
    W_out = (W + 2 - KW) // stride + 1

    # --- glue: pad spatial + im2col, done directly in bf16 ------------------
    xb = x_nhwc.astype(jnp.bfloat16)
    xb = jnp.pad(xb, ((0, 0), (1, 1), (1, 1), (0, 0)))          # (N,H+2,W+2,Cin)
    cols = []
    for kh in range(KH):
        for kw in range(KW):
            cols.append(
                xb[:, kh:kh + (H_out - 1) * stride + 1:stride,
                      kw:kw + (W_out - 1) * stride + 1:stride, :])
    patches = jnp.stack(cols, axis=-1)                          # (N,Ho,Wo,Cin,9)

    M = N * H_out * W_out
    K = Cin * KH * KW
    patches = patches.reshape(M, K)

    # --- tile-size selection -------------------------------------------------
    # Coutp: lane-dense output; 256-aligned when Cout > 128 (v6e/v7x MXU width).
    Coutp = _round_up(Cout, 256) if Cout > 128 else _round_up(Cout, 128)

    TM = 512
    if M <= TM:
        # guarantee >=2 M tiles so the "parallel" axis splits across both
        # v7x TensorCores even for small / strided layers.
        TM = max(_round_up(pl.cdiv(M, 2), 8), 8)

    # K-tiling so (patches, weights, y, acc) stay under the VMEM budget.
    Kp = _round_up(K, 128)
    n_k = 1
    TK = Kp
    while _pass1_footprint(TM, TK, Coutp) > _VMEM_BUDGET and TK > 512:
        n_k += 1
        TK = _round_up(pl.cdiv(Kp, n_k), 128)
    while _pass1_footprint(TM, TK, Coutp) > _VMEM_BUDGET and TM > 128:
        TM = max(128, _round_up(TM // 2, 8))
    Kp = TK * n_k                       # final (possibly re-padded) K extent

    Mp = _round_up(M, TM)
    n_m = Mp // TM

    # zero-padded rows/cols contribute nothing to the matmul or the stats.
    patches_p = jnp.pad(patches, ((0, Mp - M), (0, Kp - K)))
    w_mat = w.reshape(Cout, K).T                                 # (K, Cout)
    w_p = jnp.pad(w_mat, ((0, Kp - K), (0, Coutp - Cout))).astype(jnp.bfloat16)

    # --- pass 1: K-tiled conv matmul + partial BN stats ----------------------
    y, stats = pl.pallas_call(
        _conv_stats_kernel,
        out_shape=(
            jax.ShapeDtypeStruct((Mp, Coutp), jnp.bfloat16),
            jax.ShapeDtypeStruct((n_m, 2, Coutp), jnp.float32),
        ),
        grid_spec=pltpu.PrefetchScalarGridSpec(
            num_scalar_prefetch=0,
            grid=(n_m, n_k),
            in_specs=[
                pl.BlockSpec((TM, TK), lambda i, k: (i, k)),
                pl.BlockSpec((TK, Coutp), lambda i, k: (k, 0)),
            ],
            out_specs=[
                pl.BlockSpec((TM, Coutp), lambda i, k: (i, 0)),
                pl.BlockSpec((1, 2, Coutp), lambda i, k: (i, 0, 0)),
            ],
            scratch_shapes=[pltpu.VMEM((TM, Coutp), jnp.float32)],
        ),
        compiler_params=pltpu.CompilerParams(
            dimension_semantics=("parallel", "arbitrary"),
            vmem_limit_bytes=_VMEM_LIMIT),
    )(patches_p, w_p)

    # --- tiny JAX glue: global stats + folded scale/shift --------------------
    # Padded rows/cols are exact zeros, so divide by the true M.
    sums = jnp.sum(stats, axis=0)                                # (2, Coutp)
    mean = sums[0] / M
    # NOTE: one-pass E[y^2]-mean^2 can cancel for |mean| >> std channels.
    var = jnp.maximum(sums[1] / M - mean * mean, 0.0)
    gamma_p = jnp.pad(gamma.astype(jnp.float32), (0, Coutp - Cout))
    beta_p = jnp.pad(beta.astype(jnp.float32), (0, Coutp - Cout))
    scale = gamma_p * jax.lax.rsqrt(var + EPS)
    shift = beta_p - mean * scale
    scale_row = scale.reshape(1, Coutp)
    shift_row = shift.reshape(1, Coutp)

    # --- pass 2: normalize + LeakyReLU (decoupled, larger streaming tiles) ---
    TM2, n2 = TM, n_m
    for g in (8, 4, 2):
        if (n_m % g == 0 and n_m // g >= 2
                and TM * g * Coutp * 12 <= _PASS2_BUDGET):
            TM2, n2 = TM * g, n_m // g
            break

    out_p = pl.pallas_call(
        _bn_act_kernel,
        out_shape=jax.ShapeDtypeStruct((Mp, Coutp), jnp.float32),
        grid_spec=pltpu.PrefetchScalarGridSpec(
            num_scalar_prefetch=0,
            grid=(n2,),
            in_specs=[
                pl.BlockSpec((TM2, Coutp), lambda i: (i, 0)),
                pl.BlockSpec((1, Coutp), lambda i: (0, 0)),
                pl.BlockSpec((1, Coutp), lambda i: (0, 0)),
            ],
            out_specs=pl.BlockSpec((TM2, Coutp), lambda i: (i, 0)),
        ),
        compiler_params=pltpu.CompilerParams(
            dimension_semantics=("parallel",),
            vmem_limit_bytes=_VMEM_LIMIT),
    )(y, scale_row, shift_row)

    # --- glue: slice off padding --------------------------------------------
    return out_p[:M, :Cout].reshape(N, H_out, W_out, Cout)


@functools.partial(jax.jit, static_argnames=("stride",))
def disc_layer(x_nchw, w, b, gamma, beta, *, stride: int):
    """NCHW entry point (PyTorch interface parity).  Stacked layers should use
    disc_layer_nhwc directly to avoid the NCHW<->NHWC transposes."""
    x = jnp.transpose(x_nchw, (0, 2, 3, 1))                      # (N,H,W,Cin)
    out = disc_layer_nhwc(x, w, b, gamma, beta, stride=stride)
    return jnp.transpose(out, (0, 3, 1, 2))                      # (N,Cout,Ho,Wo)


# ---------------------------------------------------------------------------
# Pure-JAX reference (matches the PyTorch module in training mode).
# ---------------------------------------------------------------------------
def _reference(x, w, b, gamma, beta, stride):
    y = jax.lax.conv_general_dilated(
        x, w, window_strides=(stride, stride), padding=((1, 1), (1, 1)),
        dimension_numbers=("NCHW", "OIHW", "NCHW"))
    y = y + b[None, :, None, None]
    mean = jnp.mean(y, axis=(0, 2, 3), keepdims=True)
    var = jnp.mean((y - mean) ** 2, axis=(0, 2, 3), keepdims=True)
    y_hat = (y - mean) * jax.lax.rsqrt(var + EPS)
    z = y_hat * gamma[None, :, None, None] + beta[None, :, None, None]
    return jnp.where(z >= 0, z, NEG_SLOPE * z)


if __name__ == "__main__":
    key = jax.random.PRNGKey(0)
    kx, kw, kb, kg, kbe = jax.random.split(key, 5)

    N, Cin, H, W = 2, 4, 16, 16
    Cout = 8

    x = jax.random.normal(kx, (N, Cin, H, W), dtype=jnp.float32)
    w = jax.random.normal(kw, (Cout, Cin, 3, 3), dtype=jnp.float32) * 0.1
    b = jax.random.normal(kb, (Cout,), dtype=jnp.float32) * 0.1
    gamma = 1.0 + 0.1 * jax.random.normal(kg, (Cout,), dtype=jnp.float32)
    beta = 0.1 * jax.random.normal(kbe, (Cout,), dtype=jnp.float32)

    # stride=1 layer
    out1 = disc_layer(x, w, b, gamma, beta, stride=1)
    jax.block_until_ready(out1)
    assert out1.shape == (N, Cout, H, W), out1.shape
    err1 = float(jnp.max(jnp.abs(out1 - _reference(x, w, b, gamma, beta, 1))))
    assert err1 < 0.1, f"stride=1 max abs err {err1}"

    # stride=2 layer (exercises the strided im2col / small-M >=2-tile path)
    out2 = disc_layer(x, w, b, gamma, beta, stride=2)
    jax.block_until_ready(out2)
    assert out2.shape == (N, Cout, H // 2, W // 2), out2.shape
    err2 = float(jnp.max(jnp.abs(out2 - _reference(x, w, b, gamma, beta, 2))))
    assert err2 < 0.1, f"stride=2 max abs err {err2}"

    # NHWC-native entry point (what stacked discriminator layers should call)
    out3 = disc_layer_nhwc(jnp.transpose(x, (0, 2, 3, 1)), w, b, gamma, beta,
                           stride=1)
    jax.block_until_ready(out3)
    assert out3.shape == (N, H, W, Cout), out3.shape
    err3 = float(jnp.max(jnp.abs(jnp.transpose(out3, (0, 3, 1, 2)) - out1)))
    assert err3 < 1e-5, f"nhwc/nchw mismatch {err3}"

    print("KERNEL_OK")
</pallas_src>

<mosaic_0001>
module attributes {stable_mosaic.version = 11 : i64} {
  func.func @_conv_stats_kernel(%arg0: i32, %arg1: i32, %arg2: memref<256x128xbf16, #tpu.memory_space<vmem>>, %arg3: memref<128x128xbf16, #tpu.memory_space<vmem>>, %arg4: memref<256x128xbf16, #tpu.memory_space<vmem>>, %arg5: memref<1x2x128xf32, #tpu.memory_space<vmem>>, %arg6: memref<256x128xf32, #tpu.memory_space<vmem>>) attributes {dimension_semantics = [#tpu.dimension_semantics<parallel>, #tpu.dimension_semantics<arbitrary>], iteration_bounds = array<i64: 2, 1>, scalar_prefetch = 0 : i64, scratch_operands = 1 : i64, tpu.core_type = #tpu.core_type<tc>, window_params = [{transform_indices = @transform_0, window_bounds = array<i64: 256, 128>}, {transform_indices = @transform_1, window_bounds = array<i64: 128, 128>}, {transform_indices = @transform_2, window_bounds = array<i64: 256, 128>}, {transform_indices = @transform_3, window_bounds = array<i64: 1, 2, 128>}]} {
    %c0_i32 = arith.constant 0 : i32
    %0 = arith.cmpi eq, %arg1, %c0_i32 : i32
    %1 = arith.extui %0 : i1 to i32
    %c0_i32_0 = arith.constant 0 : i32
    %2 = arith.cmpi ne, %1, %c0_i32_0 : i32
    scf.if %2 {
      %cst_10 = arith.constant 0.000000e+00 : f32
      %12 = vector.broadcast %cst_10 : f32 to vector<256x128xf32>
      %c0_11 = arith.constant 0 : index
      %c0_12 = arith.constant 0 : index
      %13 = vector.load %arg6[%c0_11, %c0_12] : memref<256x128xf32, #tpu.memory_space<vmem>>, vector<256x128xf32>
      tpu.vector_store %arg6[%c0_11, %c0_12], %12 {strides = array<i32>} : memref<256x128xf32, #tpu.memory_space<vmem>>, vector<256x128xf32>,
    } else {
    }
    %c0 = arith.constant 0 : index
    %c0_1 = arith.constant 0 : index
    %3 = vector.load %arg6[%c0, %c0_1] : memref<256x128xf32, #tpu.memory_space<vmem>>, vector<256x128xf32>
    %c0_2 = arith.constant 0 : index
    %c0_3 = arith.constant 0 : index
    %4 = vector.load %arg2[%c0_2, %c0_3] : memref<256x128xbf16, #tpu.memory_space<vmem>>, vector<256x128xbf16>
    %c0_4 = arith.constant 0 : index
    %c0_5 = arith.constant 0 : index
    %5 = vector.load %arg3[%c0_4, %c0_5] : memref<128x128xbf16, #tpu.memory_space<vmem>>, vector<128x128xbf16>
    %cst = arith.constant dense<0.000000e+00> : vector<256x128xf32>
    %6 = tpu.matmul %4, %5, %cst {dimension_numbers = #tpu.dot_dimension_numbers<[1], [0], [0], [1], [0, 0, 1, 1], [], []>} : vector<256x128xbf16>, vector<128x128xbf16>, vector<256x128xf32> -> vector<256x128xf32>
    %7 = arith.addf %3, %6 : vector<256x128xf32>
    %c0_6 = arith.constant 0 : index
    %c0_7 = arith.constant 0 : index
    %8 = vector.load %arg6[%c0_6, %c0_7] : memref<256x128xf32, #tpu.memory_space<vmem>>, vector<256x128xf32>
    tpu.vector_store %arg6[%c0_6, %c0_7], %7 {strides = array<i32>} : memref<256x128xf32, #tpu.memory_space<vmem>>, vector<256x128xf32>,
    %c0_i32_8 = arith.constant 0 : i32
    %9 = arith.cmpi eq, %arg1, %c0_i32_8 : i32
    %10 = arith.extui %9 : i1 to i32
    %c0_i32_9 = arith.constant 0 : i32
    %11 = arith.cmpi ne, %10, %c0_i32_9 : i32
    scf.if %11 {
      %c0_10 = arith.constant 0 : index
      %c0_11 = arith.constant 0 : index
      %12 = vector.load %arg6[%c0_10, %c0_11] : memref<256x128xf32, #tpu.memory_space<vmem>>, vector<256x128xf32>
      %13 = arith.truncf %12 : vector<256x128xf32> to vector<256x128xbf16>
      %c0_12 = arith.constant 0 : index
      %c0_13 = arith.constant 0 : index
      %14 = vector.load %arg4[%c0_12, %c0_13] : memref<256x128xbf16, #tpu.memory_space<vmem>>, vector<256x128xbf16>
      tpu.vector_store %arg4[%c0_12, %c0_13], %13 {strides = array<i32>} : memref<256x128xbf16, #tpu.memory_space<vmem>>, vector<256x128xbf16>,
      %cst_14 = arith.constant dense<0.000000e+00> : vector<128xf32>
      %15 = vector.multi_reduction <add>, %12, %cst_14 [0] : vector<256x128xf32> to vector<128xf32>
      %16 = arith.mulf %12, %12 : vector<256x128xf32>
      %cst_15 = arith.constant dense<0.000000e+00> : vector<128xf32>
      %17 = vector.multi_reduction <add>, %16, %cst_15 [0] : vector<256x128xf32> to vector<128xf32>
      %18 = vector.shape_cast %15 : vector<128xf32> to vector<1x128xf32>
      %19 = vector.shape_cast %17 : vector<128xf32> to vector<1x128xf32>
      %20 = tpu.concatenate %18, %19 in 0 : vector<1x128xf32>, vector<1x128xf32> -> vector<2x128xf32>
      %21 = vector.shape_cast %20 : vector<2x128xf32> to vector<1x2x128xf32>
      %c0_16 = arith.constant 0 : index
      %c0_17 = arith.constant 0 : index
      %c0_18 = arith.constant 0 : index
      %22 = vector.load %arg5[%c0_16, %c0_17, %c0_18] : memref<1x2x128xf32, #tpu.memory_space<vmem>>, vector<1x2x128xf32>
      tpu.vector_store %arg5[%c0_16, %c0_17, %c0_18], %21 {strides = array<i32>} : memref<1x2x128xf32, #tpu.memory_space<vmem>>, vector<1x2x128xf32>,
    } else {
    }
    return
  }
  func.func @transform_0(%arg0: i32, %arg1: i32) -> (i32, i32) {
    %c0_i32 = arith.constant 0 : i32
    return %arg0, %arg1 : i32, i32
  }
  func.func @transform_1(%arg0: i32, %arg1: i32) -> (i32, i32) {
    %c0_i32 = arith.constant 0 : i32
    %c0_i32_0 = arith.constant 0 : i32
    return %arg1, %c0_i32 : i32, i32
  }
  func.func @transform_2(%arg0: i32, %arg1: i32) -> (i32, i32) {
    %c0_i32 = arith.constant 0 : i32
    %c0_i32_0 = arith.constant 0 : i32
    return %arg0, %c0_i32 : i32, i32
  }
  func.func @transform_3(%arg0: i32, %arg1: i32) -> (i32, i32, i32) {
    %c0_i32 = arith.constant 0 : i32
    %c0_i32_0 = arith.constant 0 : i32
    %c0_i32_1 = arith.constant 0 : i32
    return %arg0, %c0_i32, %c0_i32_0 : i32, i32, i32
  }
}

module attributes {stable_mosaic.version = 11 : i64} {
  func.func @_bn_act_kernel(%arg0: i32, %arg1: memref<256x128xbf16, #tpu.memory_space<vmem>>, %arg2: memref<1x128xf32, #tpu.memory_space<vmem>>, %arg3: memref<1x128xf32, #tpu.memory_space<vmem>>, %arg4: memref<256x128xf32, #tpu.memory_space<vmem>>) attributes {dimension_semantics = [#tpu.dimension_semantics<parallel>], iteration_bounds = array<i64: 2>, scalar_prefetch = 0 : i64, scratch_operands = 0 : i64, tpu.core_type = #tpu.core_type<tc>, window_params = [{transform_indices = @transform_0, window_bounds = array<i64: 256, 128>}, {pipeline_mode = #tpu.pipeline_mode<synchronous>, transform_indices = @transform_1, window_bounds = array<i64: 1, 128>}, {pipeline_mode = #tpu.pipeline_mode<synchronous>, transform_indices = @transform_2, window_bounds = array<i64: 1, 128>}, {transform_indices = @transform_3, window_bounds = array<i64: 256, 128>}]} {
    %c0 = arith.constant 0 : index
    %c0_0 = arith.constant 0 : index
    %0 = vector.load %arg1[%c0, %c0_0] : memref<256x128xbf16, #tpu.memory_space<vmem>>, vector<256x128xbf16>
    %1 = arith.extf %0 : vector<256x128xbf16> to vector<256x128xf32>
    %c0_1 = arith.constant 0 : index
    %c0_2 = arith.constant 0 : index
    %2 = vector.load %arg2[%c0_1, %c0_2] : memref<1x128xf32, #tpu.memory_space<vmem>>, vector<1x128xf32>
    %3 = vector.broadcast %2 : vector<1x128xf32> to vector<256x128xf32>
    %4 = arith.mulf %1, %3 : vector<256x128xf32>
    %c0_3 = arith.constant 0 : index
    %c0_4 = arith.constant 0 : index
    %5 = vector.load %arg3[%c0_3, %c0_4] : memref<1x128xf32, #tpu.memory_space<vmem>>, vector<1x128xf32>
    %6 = vector.broadcast %5 : vector<1x128xf32> to vector<256x128xf32>
    %7 = arith.addf %4, %6 : vector<256x128xf32>
    %cst = arith.constant 0.000000e+00 : f32
    %8 = vector.broadcast %cst : f32 to vector<256x128xf32>
    %9 = arith.cmpf oge, %7, %8 : vector<256x128xf32>
    %cst_5 = arith.constant 2.000000e-01 : f32
    %10 = vector.broadcast %cst_5 : f32 to vector<256x128xf32>
    %11 = arith.mulf %10, %7 : vector<256x128xf32>
    %12 = arith.select %9, %7, %11 : vector<256x128xi1>, vector<256x128xf32>
    %c0_6 = arith.constant 0 : index
    %c0_7 = arith.constant 0 : index
    %13 = vector.load %arg4[%c0_6, %c0_7] : memref<256x128xf32, #tpu.memory_space<vmem>>, vector<256x128xf32>
    tpu.vector_store %arg4[%c0_6, %c0_7], %12 {strides = array<i32>} : memref<256x128xf32, #tpu.memory_space<vmem>>, vector<256x128xf32>,
    return
  }
  func.func @transform_0(%arg0: i32) -> (i32, i32) {
    %c0_i32 = arith.constant 0 : i32
    %c0_i32_0 = arith.constant 0 : i32
    return %arg0, %c0_i32 : i32, i32
  }
  func.func @transform_1(%arg0: i32) -> (i32, i32) {
    %c0_i32 = arith.constant 0 : i32
    %c0_i32_0 = arith.constant 0 : i32
    %c0_i32_1 = arith.constant 0 : i32
    return %c0_i32, %c0_i32_0 : i32, i32
  }
  func.func @transform_2(%arg0: i32) -> (i32, i32) {
    %c0_i32 = arith.constant 0 : i32
    %c0_i32_0 = arith.constant 0 : i32
    %c0_i32_1 = arith.constant 0 : i32
    return %c0_i32, %c0_i32_0 : i32, i32
  }
  func.func @transform_3(%arg0: i32) -> (i32, i32) {
    %c0_i32 = arith.constant 0 : i32
    %c0_i32_0 = arith.constant 0 : i32
    return %arg0, %c0_i32 : i32, i32
  }
}

</mosaic_0001>

<llo_original>
// kernel: disc_layer_nhwc.3
$region0: #{disc_layer_nhwc.3}
  #allocation0 [shape = 'u32[]', space=smem, size = 0x4, offset = 0x4, fixed_abs, tag = 'smem constant byte address 0x4 - core index']
  #allocation1 [shape = 'u32[72,128]{1,0:T(1,128)}', space=vmem, size = 0x9000, scoped, tag = 'internal scratch']
  %s0 = inlined_call_operand.vmem [shape: bf16[512,128], index: 0, kind: input, shape index: {}]
  %s1 = inlined_call_operand.vmem [shape: f32[1,128], index: 1, kind: input, shape index: {}]
  %s2 = inlined_call_operand.vmem [shape: f32[1,128], index: 2, kind: input, shape index: {}]
  %s3 = inlined_call_operand.vmem [shape: f32[512,128], index: 3, kind: output, shape index: {}]
  %s4 = sld [smem:[#allocation0]]
  $region45: #{disc_layer_nhwc.3} parent=0
    _
  %s6 = ssub.s32 1, %s4
  %s7 = scalar_select 0, %s6, %s4
  loop: start=0, step=1, limit=4
  $region2: #{disc_layer_nhwc.3} parent=0 // loop_pre_header
    _
  $region3: #{disc_layer_nhwc.3} parent=0 // loop_header
    %s9 = sphi 0, %s13
    %p10 = scmp.ge.s32.totalorder %s9, 4
    %s19 = sphi 0, %s21
    %s22 = sphi 0, %s19
    %s23 = sphi 0, %s22
    %s39 = sphi 0, %s23
    %s43 = sphi 0, %s43
    %s45 = sphi 0, %s43
    %s46 = sphi 0, %s45
    %s60 = sphi 0, %s46
    %s64 = sphi 0, %s64
    %s66 = sphi 0, %s64
    %s67 = sphi 0, %s66
    %s81 = sphi 0, %s67
    %s87 = sphi 0, %s89
    %s90 = sphi 0, %s87
    %s91 = sphi 0, %s90
    %s107 = sphi 0, %s91
  $region4: #{disc_layer_nhwc.3} parent=0 // loop_header_branch
    %12 = sbr.rel (%p10) target = $region8
  $region5: #{disc_layer_nhwc.3} parent=0 // loop_body
    %s14 = ssub.s32 %s9, 1
    %s15 = ssub.s32 %s9, 2
    %s16 = sadd.s32 %s9, 1
    %s17 = ssub.s32 %s9, %s16
    %p18 = scmp.eq.s32.totalorder %s17, 0
    %s20 = sadd.s32 %s19, 1
    %s21 = scalar_select %p18, %s19, %s20
    %p24 = pneg %p18
    %p25 = scmp.eq.s32.totalorder %s9, 1
    %p26 = por %p24, %p25
    %p27 = scmp.ne.s32.totalorder %s19, %s22
    %p28 = scmp.eq.s32.totalorder %s9, 0
    %p29 = por %p27, %p28
    %p30 = scmp.ne.s32.totalorder %s19, %s22
    %p31 = scmp.eq.s32.totalorder %s14, 1
    %p32 = por %p30, %p31
    %p33 = scmp.ne.s32.totalorder %s22, %s23
    %p34 = scmp.eq.s32.totalorder %s14, 0
    %p35 = por %p33, %p34
    %p36 = scmp.ne.s32.totalorder %s22, %s23
    %p37 = scmp.eq.s32.totalorder %s15, 1
    %p38 = por %p36, %p37
    %p40 = scmp.ne.s32.totalorder %s23, %s39
    %p41 = scmp.eq.s32.totalorder %s15, 0
    %p42 = por %p40, %p41
    %s44 = sadd.s32 %s43, 1
    %p47 = scmp.eq.s32.totalorder %s9, 1
    %p48 = scmp.ne.s32.totalorder %s43, %s45
    %p49 = scmp.eq.s32.totalorder %s9, 0
    %p50 = por %p48, %p49
    %p51 = scmp.ne.s32.totalorder %s43, %s45
    %p52 = scmp.eq.s32.totalorder %s14, 1
    %p53 = por %p51, %p52
    %p54 = scmp.ne.s32.totalorder %s45, %s46
    %p55 = scmp.eq.s32.totalorder %s14, 0
    %p56 = por %p54, %p55
    %p57 = scmp.ne.s32.totalorder %s45, %s46
    %p58 = scmp.eq.s32.totalorder %s15, 1
    %p59 = por %p57, %p58
    %p61 = scmp.ne.s32.totalorder %s46, %s60
    %p62 = scmp.eq.s32.totalorder %s15, 0
    %p63 = por %p61, %p62
    %s65 = sadd.s32 %s64, 1
    %p68 = scmp.eq.s32.totalorder %s9, 1
    %p69 = scmp.ne.s32.totalorder %s64, %s66
    %p70 = scmp.eq.s32.totalorder %s9, 0
    %p71 = por %p69, %p70
    %p72 = scmp.ne.s32.totalorder %s64, %s66
    %p73 = scmp.eq.s32.totalorder %s14, 1
    %p74 = por %p72, %p73
    %p75 = scmp.ne.s32.totalorder %s66, %s67
    %p76 = scmp.eq.s32.totalorder %s14, 0
    %p77 = por %p75, %p76
    %p78 = scmp.ne.s32.totalorder %s66, %s67
    %p79 = scmp.eq.s32.totalorder %s15, 1
    %p80 = por %p78, %p79
    %p82 = scmp.ne.s32.totalorder %s67, %s81
    %p83 = scmp.eq.s32.totalorder %s15, 0
    %p84 = por %p82, %p83
    %s85 = ssub.s32 %s9, %s16
    %p86 = scmp.eq.s32.totalorder %s85, 0
    %s88 = sadd.s32 %s87, 1
    %s89 = scalar_select %p86, %s87, %s88
    %p92 = pneg %p86
    %p93 = scmp.eq.s32.totalorder %s9, 1
    %p94 = por %p92, %p93
    %p95 = scmp.ne.s32.totalorder %s87, %s90
    %p96 = scmp.eq.s32.totalorder %s9, 0
    %p97 = por %p95, %p96
    %p98 = scmp.ne.s32.totalorder %s87, %s90
    %p99 = scmp.eq.s32.totalorder %s14, 1
    %p100 = por %p98, %p99
    %p101 = scmp.ne.s32.totalorder %s90, %s91
    %p102 = scmp.eq.s32.totalorder %s14, 0
    %p103 = por %p101, %p102
    %p104 = scmp.ne.s32.totalorder %s90, %s91
    %p105 = scmp.eq.s32.totalorder %s15, 1
    %p106 = por %p104, %p105
    %p108 = scmp.ne.s32.totalorder %s91, %s107
    %p109 = scmp.eq.s32.totalorder %s15, 0
    %p110 = por %p108, %p109
    %p111 = scmp.le.s32.totalorder 1, %s9
    %p112 = scmp.lt.s32.totalorder %s9, 3
    %p113 = pnand %p111, %p112
    %p114 = pneg %p113
    // Predicated region
    $region9: #{disc_layer_nhwc.3} parent=5 // pred_check
      _
    $region10: #{disc_layer_nhwc.3} parent=5 // pred_check_branch
      %116 = sbr.rel (%p113) target = $region12
    $region11: #{disc_layer_nhwc.3} parent=5 // pred_region
      %s117 = ssub.s32 %s9, 1
      // Predicated region
      $region13: #{disc_layer_nhwc.3} parent=11 // pred_check
        %p118 = pneg %p56
      $region14: #{disc_layer_nhwc.3} parent=11 // pred_check_branch
        %120 = sbr.rel (%p118) target = $region16
      $region15: #{disc_layer_nhwc.3} parent=11 // pred_region
        _
      $region16: #{disc_layer_nhwc.3} parent=11 // pred_fallthru
        _
      // Predicated region
      $region17: #{disc_layer_nhwc.3} parent=11 // pred_check
        %p121 = pneg %p77
      $region18: #{disc_layer_nhwc.3} parent=11 // pred_check_branch
        %123 = sbr.rel (%p121) target = $region20
      $region19: #{disc_layer_nhwc.3} parent=11 // pred_region
        _
      $region20: #{disc_layer_nhwc.3} parent=11 // pred_fallthru
        _
    $region12: #{disc_layer_nhwc.3} parent=5 // pred_fallthru
      _
    %p124 = scmp.lt.s32.totalorder %s9, 2
    // Predicated region
    $region21: #{disc_layer_nhwc.3} parent=5 // pred_check
      %p125 = pneg %p124
    $region22: #{disc_layer_nhwc.3} parent=5 // pred_check_branch
      %127 = sbr.rel (%p125) target = $region24
    $region23: #{disc_layer_nhwc.3} parent=5 // pred_region
      // Predicated region
      $region25: #{disc_layer_nhwc.3} parent=23 // pred_check
        %p128 = pneg %p29
      $region26: #{disc_layer_nhwc.3} parent=23 // pred_check_branch
        %130 = sbr.rel (%p128) target = $region28
      $region27: #{disc_layer_nhwc.3} parent=23 // pred_region
        %s131 = smul.u32 32, %s9
        %p132 = scmp.lt.s32.totalorder %s131, 63
        %s133 = scalar_select %p132, %s131, 63
        %s134 = smul.addr %s133, 4
        %s135 = scalar_lea.vmem %s0, %s134
        %s136 = smul.u32 32, %s9
      $region28: #{disc_layer_nhwc.3} parent=23 // pred_fallthru
        _
    $region24: #{disc_layer_nhwc.3} parent=5 // pred_fallthru
      _
    %p137 = scmp.le.s32.totalorder 1, %s9
    %p138 = scmp.lt.s32.totalorder %s9, 3
    %p139 = pnand %p137, %p138
    %p140 = pneg %p139
    // Predicated region
    $region29: #{disc_layer_nhwc.3} parent=5 // pred_check
      _
    $region30: #{disc_layer_nhwc.3} parent=5 // pred_check_branch
      %142 = sbr.rel (%p139) target = $region32
    $region31: #{disc_layer_nhwc.3} parent=5 // pred_region
      %s143 = ssub.s32 %s9, 1
      %s144 = smul.u32 32, %s14
      %p145 = scmp.lt.s32.totalorder %s144, 63
      %s146 = scalar_select %p145, %s144, 63
      %s147 = smul.addr %s146, 4
      %s148 = scalar_lea.vmem %s0, %s147
      %p149 = pneg %p35
      %p150 = pneg %p32
      %p151 = pneg %p56
      %p152 = pneg %p53
      %p153 = pneg %p77
      %p154 = pneg %p74
      %p155 = pneg %p103
      %p156 = pneg %p100
      %s157 = smul.u32 32, %s14
      %p158 = scmp.lt.s32.totalorder %s157, 63
      %s159 = scalar_select %p158, %s157, 63
      %s160 = smul.addr %s159, 8
      %s161 = scalar_lea.vmem %s3, %s160
      %s162 = smul.u32 32, %s14
      %p163 = scmp.lt.s32.totalorder %s162, 63
      %s164 = scalar_select %p163, %s162, 63
      %s165 = smul.addr %s164, 4
      %s166 = scalar_lea.vmem %s0, %s165
      %s167 = smul.u32 32, %s14
      %s168 = smul.u32 32, %s14
      %p169 = scmp.lt.s32.totalorder %s168, 63
      %s170 = scalar_select %p169, %s168, 63
      %s171 = smul.addr %s170, 8
      %s172 = scalar_lea.vmem %s3, %s171
      %s173 = smul.u32 32, %s14
      %v174 = vld [vmem:[%s166] sm:$0xf]
      %v175 = vld [vmem:[%s166 + $0x4] sm:$0xf]
      %v176 = vld [vmem:[%s166 + $0x8] sm:$0xf]
      %v177 = vld [vmem:[%s166 + $0xc] sm:$0xf]
      %v178 = vld [vmem:[%s166 + $0x10] sm:$0xf]
      %v179 = vld [vmem:[%s166 + $0x14] sm:$0xf]
      %v180 = vld [vmem:[%s166 + $0x18] sm:$0xf]
      %v181 = vld [vmem:[%s166 + $0x1c] sm:$0xf]
      %v182 = vld [vmem:[%s166 + $0x20] sm:$0xf]
      %v183 = vld [vmem:[%s166 + $0x24] sm:$0xf]
      %v184 = vld [vmem:[%s166 + $0x28] sm:$0xf]
      %v185 = vld [vmem:[%s166 + $0x2c] sm:$0xf]
      %v186 = vld [vmem:[%s166 + $0x30] sm:$0xf]
      %v187 = vld [vmem:[%s166 + $0x34] sm:$0xf]
      %v188 = vld [vmem:[%s166 + $0x38] sm:$0xf]
      %v189 = vld [vmem:[%s166 + $0x3c] sm:$0xf]
      %v190 = vld [vmem:[%s166 + $0x40] sm:$0xf]
      %v191 = vld [vmem:[%s166 + $0x44] sm:$0xf]
      %v192 = vld [vmem:[%s166 + $0x48] sm:$0xf]
      %v193 = vld [vmem:[%s166 + $0x4c] sm:$0xf]
      %v194 = vld [vmem:[%s166 + $0x50] sm:$0xf]
      %v195 = vld [vmem:[%s166 + $0x54] sm:$0xf]
      %v196 = vld [vmem:[%s166 + $0x58] sm:$0xf]
      %v197 = vld [vmem:[%s166 + $0x5c] sm:$0xf]
      %v198 = vld [vmem:[%s166 + $0x60] sm:$0xf]
      %v199 = vld [vmem:[%s166 + $0x64] sm:$0xf]
      %v200 = vld [vmem:[%s166 + $0x68] sm:$0xf]
      %v201 = vld [vmem:[%s166 + $0x6c] sm:$0xf]
      %v202 = vld [vmem:[%s166 + $0x70] sm:$0xf]
      %v203 = vld [vmem:[%s166 + $0x74] sm:$0xf]
      %v204 = vld [vmem:[%s166 + $0x78] sm:$0xf]
      %v205 = vld [vmem:[%s166 + $0x7c] sm:$0xf]
      %v206 = vunpack.c.l.bf16 %v174
      %v207 = vunpack.c.l.bf16 %v175
      %v208 = vunpack.c.l.bf16 %v176
      %v209 = vunpack.c.l.bf16 %v177
      %v210 = vunpack.c.l.bf16 %v178
      %v211 = vunpack.c.l.bf16 %v179
      %v212 = vunpack.c.l.bf16 %v180
      %v213 = vunpack.c.l.bf16 %v181
      %v214 = vunpack.c.l.bf16 %v182
      %v215 = vunpack.c.l.bf16 %v183
      %v216 = vunpack.c.l.bf16 %v184
      %v217 = vunpack.c.l.bf16 %v185
      %v218 = vunpack.c.l.bf16 %v186
      %v219 = vunpack.c.l.bf16 %v187
      %v220 = vunpack.c.l.bf16 %v188
      %v221 = vunpack.c.l.bf16 %v189
      %v222 = vunpack.c.l.bf16 %v190
      %v223 = vunpack.c.l.bf16 %v191
      %v224 = vunpack.c.l.bf16 %v192
      %v225 = vunpack.c.l.bf16 %v193
      %v226 = vunpack.c.l.bf16 %v194
      %v227 = vunpack.c.l.bf16 %v195
      %v228 = vunpack.c.l.bf16 %v196
      %v229 = vunpack.c.l.bf16 %v197
      %v230 = vunpack.c.l.bf16 %v198
      %v231 = vunpack.c.l.bf16 %v199
      %v232 = vunpack.c.l.bf16 %v200
      %v233 = vunpack.c.l.bf16 %v201
      %v234 = vunpack.c.l.bf16 %v202
      %v235 = vunpack.c.l.bf16 %v203
      %v236 = vunpack.c.l.bf16 %v204
      %v237 = vunpack.c.l.bf16 %v205
      %v238 = vld [vmem:[%s1] sm:$0x1]
      %v240 = vperm.slane %v238, 0
      %v242 = vmul.f32 %v206, %v240
      %v243 = vmul.f32 %v207, %v240
      %v244 = vmul.f32 %v208, %v240
      %v245 = vmul.f32 %v209, %v240
      %v246 = vmul.f32 %v210, %v240
      %v247 = vmul.f32 %v211, %v240
      %v248 = vmul.f32 %v212, %v240
      %v249 = vmul.f32 %v213, %v240
      %v250 = vmul.f32 %v214, %v240
      %v251 = vmul.f32 %v215, %v240
      %v252 = vmul.f32 %v216, %v240
      %v253 = vmul.f32 %v217, %v240
      %v254 = vmul.f32 %v218, %v240
      %v255 = vmul.f32 %v219, %v240
      %v256 = vmul.f32 %v220, %v240
      %v257 = vmul.f32 %v221, %v240
      %v258 = vmul.f32 %v222, %v240
      %v259 = vmul.f32 %v223, %v240
      %v260 = vmul.f32 %v224, %v240
      %v261 = vmul.f32 %v225, %v240
      %v262 = vmul.f32 %v226, %v240
      %v263 = vmul.f32 %v227, %v240
      %v264 = vmul.f32 %v228, %v240
      %v265 = vmul.f32 %v229, %v240
      %v266 = vmul.f32 %v230, %v240
      %v267 = vmul.f32 %v231, %v240
      %v268 = vmul.f32 %v232, %v240
      %v269 = vmul.f32 %v233, %v240
      %v270 = vmul.f32 %v234, %v240
      %v271 = vmul.f32 %v235, %v240
      %v272 = vmul.f32 %v236, %v240
      %v273 = vmul.f32 %v237, %v240
      %v274 = vld [vmem:[%s2] sm:$0x1]
      %v276 = vperm.slane %v274, 0
      %v278 = vadd.f32 %v242, %v276
      %v279 = vadd.f32 %v243, %v276
      %v280 = vadd.f32 %v244, %v276
      %v281 = vadd.f32 %v245, %v276
      %v282 = vadd.f32 %v246, %v276
      %v283 = vadd.f32 %v247, %v276
      %v284 = vadd.f32 %v248, %v276
      %v285 = vadd.f32 %v249, %v276
      %v286 = vadd.f32 %v250, %v276
      %v287 = vadd.f32 %v251, %v276
      %v288 = vadd.f32 %v252, %v276
      %v289 = vadd.f32 %v253, %v276
      %v290 = vadd.f32 %v254, %v276
      %v291 = vadd.f32 %v255, %v276
      %v292 = vadd.f32 %v256, %v276
      %v293 = vadd.f32 %v257, %v276
      %v294 = vadd.f32 %v258, %v276
      %v295 = vadd.f32 %v259, %v276
      %v296 = vadd.f32 %v260, %v276
      %v297 = vadd.f32 %v261, %v276
      %v298 = vadd.f32 %v262, %v276
      %v299 = vadd.f32 %v263, %v276
      %v300 = vadd.f32 %v264, %v276
      %v301 = vadd.f32 %v265, %v276
      %v302 = vadd.f32 %v266, %v276
      %v303 = vadd.f32 %v267, %v276
      %v304 = vadd.f32 %v268, %v276
      %v305 = vadd.f32 %v269, %v276
      %v306 = vadd.f32 %v270, %v276
      %v307 = vadd.f32 %v271, %v276
      %v308 = vadd.f32 %v272, %v276
      %v309 = vadd.f32 %v273, %v276
      %vm310 = vcmp.ge.f32.partialorder %v278, 0.0
      %vm311 = vcmp.ge.f32.partialorder %v279, 0.0
      %vm312 = vcmp.ge.f32.partialorder %v280, 0.0
      %vm313 = vcmp.ge.f32.partialorder %v281, 0.0
      %vm314 = vcmp.ge.f32.partialorder %v282, 0.0
      %vm315 = vcmp.ge.f32.partialorder %v283, 0.0
      %vm316 = vcmp.ge.f32.partialorder %v284, 0.0
      %vm317 = vcmp.ge.f32.partialorder %v285, 0.0
      %vm318 = vcmp.ge.f32.partialorder %v286, 0.0
      %vm319 = vcmp.ge.f32.partialorder %v287, 0.0
      %vm320 = vcmp.ge.f32.partialorder %v288, 0.0
      %vm321 = vcmp.ge.f32.partialorder %v289, 0.0
      %vm322 = vcmp.ge.f32.partialorder %v290, 0.0
      %vm323 = vcmp.ge.f32.partialorder %v291, 0.0
      %vm324 = vcmp.ge.f32.partialorder %v292, 0.0
      %vm325 = vcmp.ge.f32.partialorder %v293, 0.0
      %vm326 = vcmp.ge.f32.partialorder %v294, 0.0
      %vm327 = vcmp.ge.f32.partialorder %v295, 0.0
      %vm328 = vcmp.ge.f32.partialorder %v296, 0.0
      %vm329 = vcmp.ge.f32.partialorder %v297, 0.0
      %vm330 = vcmp.ge.f32.partialorder %v298, 0.0
      %vm331 = vcmp.ge.f32.partialorder %v299, 0.0
      %vm332 = vcmp.ge.f32.partialorder %v300, 0.0
      %vm333 = vcmp.ge.f32.partialorder %v301, 0.0
      %vm334 = vcmp.ge.f32.partialorder %v302, 0.0
      %vm335 = vcmp.ge.f32.partialorder %v303, 0.0
      %vm336 = vcmp.ge.f32.partialorder %v304, 0.0
      %vm337 = vcmp.ge.f32.partialorder %v305, 0.0
      %vm338 = vcmp.ge.f32.partialorder %v306, 0.0
      %vm339 = vcmp.ge.f32.partialorder %v307, 0.0
      %vm340 = vcmp.ge.f32.partialorder %v308, 0.0
      %vm341 = vcmp.ge.f32.partialorder %v309, 0.0
      %v342 = vmul.f32 %v278, 0.2
      %v343 = vmul.f32 %v279, 0.2
      %v344 = vmul.f32 %v280, 0.2
      %v345 = vmul.f32 %v281, 0.2
      %v346 = vmul.f32 %v282, 0.2
      %v347 = vmul.f32 %v283, 0.2
      %v348 = vmul.f32 %v284, 0.2
      %v349 = vmul.f32 %v285, 0.2
      %v350 = vmul.f32 %v286, 0.2
      %v351 = vmul.f32 %v287, 0.2
      %v352 = vmul.f32 %v288, 0.2
      %v353 = vmul.f32 %v289, 0.2
      %v354 = vmul.f32 %v290, 0.2
      %v355 = vmul.f32 %v291, 0.2
      %v356 = vmul.f32 %v292, 0.2
      %v357 = vmul.f32 %v293, 0.2
      %v358 = vmul.f32 %v294, 0.2
      %v359 = vmul.f32 %v295, 0.2
      %v360 = vmul.f32 %v296, 0.2
      %v361 = vmul.f32 %v297, 0.2
      %v362 = vmul.f32 %v298, 0.2
      %v363 = vmul.f32 %v299, 0.2
      %v364 = vmul.f32 %v300, 0.2
      %v365 = vmul.f32 %v301, 0.2
      %v366 = vmul.f32 %v302, 0.2
      %v367 = vmul.f32 %v303, 0.2
      %v368 = vmul.f32 %v304, 0.2
      %v369 = vmul.f32 %v305, 0.2
      %v370 = vmul.f32 %v306, 0.2
      %v371 = vmul.f32 %v307, 0.2
      %v372 = vmul.f32 %v308, 0.2
      %v373 = vmul.f32 %v309, 0.2
      %v374 = vsel %vm310, %v278, %v342
      %v375 = vsel %vm311, %v279, %v343
      %v376 = vsel %vm312, %v280, %v344
      %v377 = vsel %vm313, %v281, %v345
      %v378 = vsel %vm314, %v282, %v346
      %v379 = vsel %vm315, %v283, %v347
      %v380 = vsel %vm316, %v284, %v348
      %v381 = vsel %vm317, %v285, %v349
      %v382 = vsel %vm318, %v286, %v350
      %v383 = vsel %vm319, %v287, %v351
      %v384 = vsel %vm320, %v288, %v352
      %v385 = vsel %vm321, %v289, %v353
      %v386 = vsel %vm322, %v290, %v354
      %v387 = vsel %vm323, %v291, %v355
      %v388 = vsel %vm324, %v292, %v356
      %v389 = vsel %vm325, %v293, %v357
      %v390 = vsel %vm326, %v294, %v358
      %v391 = vsel %vm327, %v295, %v359
      %v392 = vsel %vm328, %v296, %v360
      %v393 = vsel %vm329, %v297, %v361
      %v394 = vsel %vm330, %v298, %v362
      %v395 = vsel %vm331, %v299, %v363
      %v396 = vsel %vm332, %v300, %v364
      %v397 = vsel %vm333, %v301, %v365
      %v398 = vsel %vm334, %v302, %v366
      %v399 = vsel %vm335, %v303, %v367
      %v400 = vsel %vm336, %v304, %v368
      %v401 = vsel %vm337, %v305, %v369
      %v402 = vsel %vm338, %v306, %v370
      %v403 = vsel %vm339, %v307, %v371
      %v404 = vsel %vm340, %v308, %v372
      %v405 = vsel %vm341, %v309, %v373
      %406 = vst [vmem:[%s172] sm:$0xff] %v374
      %407 = vst [vmem:[%s172 + $0x8] sm:$0xff] %v375
      %408 = vst [vmem:[%s172 + $0x10] sm:$0xff] %v376
      %409 = vst [vmem:[%s172 + $0x18] sm:$0xff] %v377
      %410 = vst [vmem:[%s172 + $0x20] sm:$0xff] %v378
      %411 = vst [vmem:[%s172 + $0x28] sm:$0xff] %v379
      %412 = vst [vmem:[%s172 + $0x30] sm:$0xff] %v380
      %413 = vst [vmem:[%s172 + $0x38] sm:$0xff] %v381
      %414 = vst [vmem:[%s172 + $0x40] sm:$0xff] %v382
      %415 = vst [vmem:[%s172 + $0x48] sm:$0xff] %v383
      %416 = vst [vmem:[%s172 + $0x50] sm:$0xff] %v384
      %417 = vst [vmem:[%s172 + $0x58] sm:$0xff] %v385
      %418 = vst [vmem:[%s172 + $0x60] sm:$0xff] %v386
      %419 = vst [vmem:[%s172 + $0x68] sm:$0xff] %v387
      %420 = vst [vmem:[%s172 + $0x70] sm:$0xff] %v388
      %421 = vst [vmem:[%s172 + $0x78] sm:$0xff] %v389
      %422 = vst [vmem:[%s172 + $0x80] sm:$0xff] %v390
      %423 = vst [vmem:[%s172 + $0x88] sm:$0xff] %v391
      %424 = vst [vmem:[%s172 + $0x90] sm:$0xff] %v392
      %425 = vst [vmem:[%s172 + $0x98] sm:$0xff] %v393
      %426 = vst [vmem:[%s172 + $0xa0] sm:$0xff] %v394
      %427 = vst [vmem:[%s172 + $0xa8] sm:$0xff] %v395
      %428 = vst [vmem:[%s172 + $0xb0] sm:$0xff] %v396
      %429 = vst [vmem:[%s172 + $0xb8] sm:$0xff] %v397
      %430 = vst [vmem:[%s172 + $0xc0] sm:$0xff] %v398
      %431 = vst [vmem:[%s172 + $0xc8] sm:$0xff] %v399
      %432 = vst [vmem:[%s172 + $0xd0] sm:$0xff] %v400
      %433 = vst [vmem:[%s172 + $0xd8] sm:$0xff] %v401
      %434 = vst [vmem:[%s172 + $0xe0] sm:$0xff] %v402
      %435 = vst [vmem:[%s172 + $0xe8] sm:$0xff] %v403
      %436 = vst [vmem:[%s172 + $0xf0] sm:$0xff] %v404
      %437 = vst [vmem:[%s172 + $0xf8] sm:$0xff] %v405
      %s438 = smul.u32 32, %s14
      %p439 = scmp.lt.s32.totalorder %s438, 63
      %s440 = scalar_select %p439, %s438, 63
      %s441 = smul.addr %s440, 8
      %s442 = scalar_lea.vmem %s3, %s441
      // Predicated region
      $region33: #{disc_layer_nhwc.3} parent=31 // pred_check
        %p443 = pneg %p100
      $region34: #{disc_layer_nhwc.3} parent=31 // pred_check_branch
        %445 = sbr.rel (%p443) target = $region36
      $region35: #{disc_layer_nhwc.3} parent=31 // pred_region
        %s446 = smul.u32 32, %s14
      $region36: #{disc_layer_nhwc.3} parent=31 // pred_fallthru
        _
    $region32: #{disc_layer_nhwc.3} parent=5 // pred_fallthru
      _
    %p447 = scmp.le.s32.totalorder 2, %s9
    // Predicated region
    $region37: #{disc_layer_nhwc.3} parent=5 // pred_check
      %p448 = pneg %p447
    $region38: #{disc_layer_nhwc.3} parent=5 // pred_check_branch
      %450 = sbr.rel (%p448) target = $region40
    $region39: #{disc_layer_nhwc.3} parent=5 // pred_region
      %s451 = ssub.s32 %s9, 2
      // Predicated region
      $region41: #{disc_layer_nhwc.3} parent=39 // pred_check
        %p452 = pneg %p106
      $region42: #{disc_layer_nhwc.3} parent=39 // pred_check_branch
        %454 = sbr.rel (%p452) target = $region44
      $region43: #{disc_layer_nhwc.3} parent=39 // pred_region
        %s455 = smul.u32 32, %s15
        %p456 = scmp.lt.s32.totalorder %s455, 63
        %s457 = scalar_select %p456, %s455, 63
        %s458 = smul.addr %s457, 8
        %s459 = scalar_lea.vmem %s3, %s458
      $region44: #{disc_layer_nhwc.3} parent=39 // pred_fallthru
        _
    $region40: #{disc_layer_nhwc.3} parent=5 // pred_fallthru
      _
  $region6: #{disc_layer_nhwc.3} parent=0 // loop_footer
    %s13 = sadd.s32 1, %s9
  $region7: #{disc_layer_nhwc.3} parent=0 // loop_footer_branch
    %8 = sbr.rel target = $region3
  $region8: #{disc_layer_nhwc.3} parent=0 // loop_exit
    _

// kernel: disc_layer_nhwc.2
$region0: #{disc_layer_nhwc.2}
  #allocation0 [shape = 'u32[]', space=smem, size = 0x4, offset = 0x4, fixed_abs, tag = 'smem constant byte address 0x4 - core index']
  #allocation1 [shape = 'u32[72,128]{1,0:T(1,128)}', space=vmem, size = 0x9000, scoped, tag = 'internal scratch']
  #allocation2 [shape = 'f32[256,128]{1,0:T(8,128)}', space=vmem, size = 0x20000, scoped, tag = 'scratch operand']
  %s0 = inlined_call_operand.vmem [shape: bf16[512,128], index: 0, kind: input, shape index: {}]
  %s1 = inlined_call_operand.vmem [shape: bf16[128,128], index: 1, kind: input, shape index: {}]
  %s2 = inlined_call_operand.vmem [shape: bf16[512,128], index: 2, kind: output, shape index: {0}]
  %s3 = inlined_call_operand.vmem [shape: f32[2,2,128], index: 3, kind: output, shape index: {1}]
  %4 = xla_tuple %s2, %s3
  %s5 = sld [smem:[#allocation0]]
  $region57: #{disc_layer_nhwc.2} parent=0
    _
  %s7 = ssub.s32 1, %s5
  %s8 = scalar_select 0, %s7, %s5
  loop: start=0, step=1, limit=4
  $region2: #{disc_layer_nhwc.2} parent=0 // loop_pre_header
    _
  $region3: #{disc_layer_nhwc.2} parent=0 // loop_header
    %s10 = sphi 0, %s14
    %p11 = scmp.ge.s32.totalorder %s10, 4
    %s17 = sphi 0, %s29
    %s18 = sphi 0, %s25
    %s19 = sphi 0, %s17
    %s20 = sphi 0, %s18
    %s21 = sphi 0, %s19
    %s22 = sphi 0, %s20
    %s34 = sphi 0, %s36
    %s37 = sphi 0, %s34
    %s38 = sphi 0, %s37
    %s54 = sphi 0, %s38
    %s60 = sphi 0, %s62
    %s63 = sphi 0, %s60
    %s64 = sphi 0, %s63
    %s80 = sphi 0, %s64
    %s86 = sphi 0, %s88
    %s89 = sphi 0, %s86
    %s90 = sphi 0, %s89
    %s106 = sphi 0, %s90
    %s112 = sphi 0, %s114
    %s115 = sphi 0, %s112
    %s116 = sphi 0, %s115
    %s132 = sphi 0, %s116
  $region4: #{disc_layer_nhwc.2} parent=0 // loop_header_branch
    %13 = sbr.rel (%p11) target = $region8
  $region5: #{disc_layer_nhwc.2} parent=0 // loop_body
    %s15 = ssub.s32 %s10, 1
    %s16 = ssub.s32 %s10, 2
    %s23 = sadd.s32 1, %s18
    %p24 = scmp.ge.s32.totalorder %s23, 1
    %s25 = scalar_select %p24, 0, %s23
    %s26 = sadd.s32 1, %s17
    %s27 = scalar_select %p24, %s26, %s17
    %p28 = scmp.ge.s32.totalorder %s27, 2
    %s29 = scalar_select %p28, 0, %s27
    %s30 = ssub.s32 %s17, %s29
    %s31 = ssub.s32 %s18, %s25
    %s32 = sor.u32 %s30, %s31
    %p33 = scmp.eq.s32.totalorder %s32, 0
    %s35 = sadd.s32 %s34, 1
    %s36 = scalar_select %p33, %s34, %s35
    %p39 = pneg %p33
    %p40 = scmp.eq.s32.totalorder %s10, 1
    %p41 = por %p39, %p40
    %p42 = scmp.ne.s32.totalorder %s34, %s37
    %p43 = scmp.eq.s32.totalorder %s10, 0
    %p44 = por %p42, %p43
    %p45 = scmp.ne.s32.totalorder %s34, %s37
    %p46 = scmp.eq.s32.totalorder %s15, 1
    %p47 = por %p45, %p46
    %p48 = scmp.ne.s32.totalorder %s37, %s38
    %p49 = scmp.eq.s32.totalorder %s15, 0
    %p50 = por %p48, %p49
    %p51 = scmp.ne.s32.totalorder %s37, %s38
    %p52 = scmp.eq.s32.totalorder %s16, 1
    %p53 = por %p51, %p52
    %p55 = scmp.ne.s32.totalorder %s38, %s54
    %p56 = scmp.eq.s32.totalorder %s16, 0
    %p57 = por %p55, %p56
    %s58 = ssub.s32 %s18, %s25
    %p59 = scmp.eq.s32.totalorder %s58, 0
    %s61 = sadd.s32 %s60, 1
    %s62 = scalar_select %p59, %s60, %s61
    %p65 = pneg %p59
    %p66 = scmp.eq.s32.totalorder %s10, 1
    %p67 = por %p65, %p66
    %p68 = scmp.ne.s32.totalorder %s60, %s63
    %p69 = scmp.eq.s32.totalorder %s10, 0
    %p70 = por %p68, %p69
    %p71 = scmp.ne.s32.totalorder %s60, %s63
    %p72 = scmp.eq.s32.totalorder %s15, 1
    %p73 = por %p71, %p72
    %p74 = scmp.ne.s32.totalorder %s63, %s64
    %p75 = scmp.eq.s32.totalorder %s15, 0
    %p76 = por %p74, %p75
    %p77 = scmp.ne.s32.totalorder %s63, %s64
    %p78 = scmp.eq.s32.totalorder %s16, 1
    %p79 = por %p77, %p78
    %p81 = scmp.ne.s32.totalorder %s64, %s80
    %p82 = scmp.eq.s32.totalorder %s16, 0
    %p83 = por %p81, %p82
    %s84 = ssub.s32 %s17, %s29
    %p85 = scmp.eq.s32.totalorder %s84, 0
    %s87 = sadd.s32 %s86, 1
    %s88 = scalar_select %p85, %s86, %s87
    %p91 = pneg %p85
    %p92 = scmp.eq.s32.totalorder %s10, 1
    %p93 = por %p91, %p92
    %p94 = scmp.ne.s32.totalorder %s86, %s89
    %p95 = scmp.eq.s32.totalorder %s10, 0
    %p96 = por %p94, %p95
    %p97 = scmp.ne.s32.totalorder %s86, %s89
    %p98 = scmp.eq.s32.totalorder %s15, 1
    %p99 = por %p97, %p98
    %p100 = scmp.ne.s32.totalorder %s89, %s90
    %p101 = scmp.eq.s32.totalorder %s15, 0
    %p102 = por %p100, %p101
    %p103 = scmp.ne.s32.totalorder %s89, %s90
    %p104 = scmp.eq.s32.totalorder %s16, 1
    %p105 = por %p103, %p104
    %p107 = scmp.ne.s32.totalorder %s90, %s106
    %p108 = scmp.eq.s32.totalorder %s16, 0
    %p109 = por %p107, %p108
    %s110 = ssub.s32 %s17, %s29
    %p111 = scmp.eq.s32.totalorder %s110, 0
    %s113 = sadd.s32 %s112, 1
    %s114 = scalar_select %p111, %s112, %s113
    %p117 = pneg %p111
    %p118 = scmp.eq.s32.totalorder %s10, 1
    %p119 = por %p117, %p118
    %p120 = scmp.ne.s32.totalorder %s112, %s115
    %p121 = scmp.eq.s32.totalorder %s10, 0
    %p122 = por %p120, %p121
    %p123 = scmp.ne.s32.totalorder %s112, %s115
    %p124 = scmp.eq.s32.totalorder %s15, 1
    %p125 = por %p123, %p124
    %p126 = scmp.ne.s32.totalorder %s115, %s116
    %p127 = scmp.eq.s32.totalorder %s15, 0
    %p128 = por %p126, %p127
    %p129 = scmp.ne.s32.totalorder %s115, %s116
    %p130 = scmp.eq.s32.totalorder %s16, 1
    %p131 = por %p129, %p130
    %p133 = scmp.ne.s32.totalorder %s116, %s132
    %p134 = scmp.eq.s32.totalorder %s16, 0
    %p135 = por %p133, %p134
    %p136 = scmp.le.s32.totalorder 1, %s10
    %p137 = scmp.lt.s32.totalorder %s10, 3
    %p138 = pnand %p136, %p137
    %p139 = pneg %p138
    // Predicated region
    $region9: #{disc_layer_nhwc.2} parent=5 // pred_check
      _
    $region10: #{disc_layer_nhwc.2} parent=5 // pred_check_branch
      %141 = sbr.rel (%p138) target = $region12
    $region11: #{disc_layer_nhwc.2} parent=5 // pred_region
      %s142 = ssub.s32 %s10, 1
      // Predicated region
      $region13: #{disc_layer_nhwc.2} parent=11 // pred_check
        %p143 = pneg %p76
      $region14: #{disc_layer_nhwc.2} parent=11 // pred_check_branch
        %145 = sbr.rel (%p143) target = $region16
      $region15: #{disc_layer_nhwc.2} parent=11 // pred_region
        %s146 = smul.u32 16, %s20
        %p147 = scmp.lt.s32.totalorder %s146, 15
        %s148 = scalar_select %p147, %s146, 15
        %s149 = smul.addr %s148, 4
        %s150 = scalar_lea.vmem %s1, %s149
        %s151 = smul.u32 16, %s20
      $region16: #{disc_layer_nhwc.2} parent=11 // pred_fallthru
        _
    $region12: #{disc_layer_nhwc.2} parent=5 // pred_fallthru
      _
    %p152 = scmp.lt.s32.totalorder %s10, 2
    // Predicated region
    $region17: #{disc_layer_nhwc.2} parent=5 // pred_check
      %p153 = pneg %p152
    $region18: #{disc_layer_nhwc.2} parent=5 // pred_check_branch
      %155 = sbr.rel (%p153) target = $region20
    $region19: #{disc_layer_nhwc.2} parent=5 // pred_region
      // Predicated region
      $region21: #{disc_layer_nhwc.2} parent=19 // pred_check
        %p156 = pneg %p44
      $region22: #{disc_layer_nhwc.2} parent=19 // pred_check_branch
        %158 = sbr.rel (%p156) target = $region24
      $region23: #{disc_layer_nhwc.2} parent=19 // pred_region
        %s159 = smul.u32 32, %s17
        %p160 = scmp.lt.s32.totalorder %s159, 63
        %s161 = scalar_select %p160, %s159, 63
        %p162 = scmp.lt.s32.totalorder %s18, 0
        %s163 = scalar_select %p162, %s18, 0
        %s164 = sadd.s32 %s163, %s161
        %s165 = smul.addr %s164, 4
        %s166 = scalar_lea.vmem %s0, %s165
        %s167 = smul.u32 32, %s17
      $region24: #{disc_layer_nhwc.2} parent=19 // pred_fallthru
        _
    $region20: #{disc_layer_nhwc.2} parent=5 // pred_fallthru
      _
    %p168 = scmp.le.s32.totalorder 1, %s10
    %p169 = scmp.lt.s32.totalorder %s10, 3
    %p170 = pnand %p168, %p169
    %p171 = pneg %p170
    // Predicated region
    $region25: #{disc_layer_nhwc.2} parent=5 // pred_check
      _
    $region26: #{disc_layer_nhwc.2} parent=5 // pred_check_branch
      %173 = sbr.rel (%p170) target = $region28
    $region27: #{disc_layer_nhwc.2} parent=5 // pred_region
      %s174 = ssub.s32 %s10, 1
      %s175 = smul.u32 32, %s19
      %p176 = scmp.lt.s32.totalorder %s175, 63
      %s177 = scalar_select %p176, %s175, 63
      %p178 = scmp.lt.s32.totalorder %s20, 0
      %s179 = scalar_select %p178, %s20, 0
      %s180 = sadd.s32 %s179, %s177
      %s181 = smul.addr %s180, 4
      %s182 = scalar_lea.vmem %s0, %s181
      %p183 = pneg %p50
      %p184 = pneg %p47
      %s185 = smul.u32 16, %s20
      %p186 = scmp.lt.s32.totalorder %s185, 15
      %s187 = scalar_select %p186, %s185, 15
      %s188 = smul.addr %s187, 4
      %s189 = scalar_lea.vmem %s1, %s188
      %p190 = pneg %p76
      %p191 = pneg %p73
      %p192 = pneg %p102
      %p193 = pneg %p99
      %s194 = smul.u32 32, %s19
      %p195 = scmp.lt.s32.totalorder %s194, 63
      %s196 = scalar_select %p195, %s194, 63
      %s197 = smul.addr %s196, 4
      %s198 = scalar_lea.vmem %s2, %s197
      %p199 = pneg %p128
      %p200 = pneg %p125
      %p201 = scmp.lt.s32.totalorder %s19, 1
      %s202 = scalar_select %p201, %s19, 1
      %s203 = smul.addr %s202, 2
      %s204 = scalar_lea.vmem %s3, %s203
      %s205 = smul.u32 32, %s19
      %p206 = scmp.lt.s32.totalorder %s205, 63
      %s207 = scalar_select %p206, %s205, 63
      %p208 = scmp.lt.s32.totalorder %s20, 0
      %s209 = scalar_select %p208, %s20, 0
      %s210 = sadd.s32 %s209, %s207
      %s211 = smul.addr %s210, 4
      %s212 = scalar_lea.vmem %s0, %s211
      %s213 = smul.u32 32, %s19
      %s214 = smul.u32 16, %s20
      %p215 = scmp.lt.s32.totalorder %s214, 15
      %s216 = scalar_select %p215, %s214, 15
      %s217 = smul.addr %s216, 4
      %s218 = scalar_lea.vmem %s1, %s217
      %s219 = smul.u32 16, %s20
      %s220 = smul.u32 32, %s19
      %p221 = scmp.lt.s32.totalorder %s220, 63
      %s222 = scalar_select %p221, %s220, 63
      %s223 = smul.addr %s222, 4
      %s224 = scalar_lea.vmem %s2, %s223
      %s225 = smul.u32 32, %s19
      %p226 = scmp.lt.s32.totalorder %s19, 1
      %s227 = scalar_select %p226, %s19, 1
      %s228 = smul.addr %s227, 2
      %s229 = scalar_lea.vmem %s3, %s228
      %p230 = scmp.eq.s32.totalorder %s20, 0
      // Predicated region
      $region29: #{disc_layer_nhwc.2} parent=27 // pred_check
        %p231 = pneg %p230
      $region30: #{disc_layer_nhwc.2} parent=27 // pred_check_branch
        %233 = sbr.rel (%p231) target = $region32
      $region31: #{disc_layer_nhwc.2} parent=27 // pred_region
        %234 = vst [vmem:[#allocation2] sm:$0xff] 0.0
        %235 = vst [vmem:[#allocation2 + $0x8] sm:$0xff] 0.0
        %236 = vst [vmem:[#allocation2 + $0x10] sm:$0xff] 0.0
        %237 = vst [vmem:[#allocation2 + $0x18] sm:$0xff] 0.0
        %238 = vst [vmem:[#allocation2 + $0x20] sm:$0xff] 0.0
        %239 = vst [vmem:[#allocation2 + $0x28] sm:$0xff] 0.0
        %240 = vst [vmem:[#allocation2 + $0x30] sm:$0xff] 0.0
        %241 = vst [vmem:[#allocation2 + $0x38] sm:$0xff] 0.0
        %242 = vst [vmem:[#allocation2 + $0x40] sm:$0xff] 0.0
        %243 = vst [vmem:[#allocation2 + $0x48] sm:$0xff] 0.0
        %244 = vst [vmem:[#allocation2 + $0x50] sm:$0xff] 0.0
        %245 = vst [vmem:[#allocation2 + $0x58] sm:$0xff] 0.0
        %246 = vst [vmem:[#allocation2 + $0x60] sm:$0xff] 0.0
        %247 = vst [vmem:[#allocation2 + $0x68] sm:$0xff] 0.0
        %248 = vst [vmem:[#allocation2 + $0x70] sm:$0xff] 0.0
        %249 = vst [vmem:[#allocation2 + $0x78] sm:$0xff] 0.0
        %250 = vst [vmem:[#allocation2 + $0x80] sm:$0xff] 0.0
        %251 = vst [vmem:[#allocation2 + $0x88] sm:$0xff] 0.0
        %252 = vst [vmem:[#allocation2 + $0x90] sm:$0xff] 0.0
        %253 = vst [vmem:[#allocation2 + $0x98] sm:$0xff] 0.0
        %254 = vst [vmem:[#allocation2 + $0xa0] sm:$0xff] 0.0
        %255 = vst [vmem:[#allocation2 + $0xa8] sm:$0xff] 0.0
        %256 = vst [vmem:[#allocation2 + $0xb0] sm:$0xff] 0.0
        %257 = vst [vmem:[#allocation2 + $0xb8] sm:$0xff] 0.0
        %258 = vst [vmem:[#allocation2 + $0xc0] sm:$0xff] 0.0
        %259 = vst [vmem:[#allocation2 + $0xc8] sm:$0xff] 0.0
        %260 = vst [vmem:[#allocation2 + $0xd0] sm:$0xff] 0.0
        %261 = vst [vmem:[#allocation2 + $0xd8] sm:$0xff] 0.0
        %262 = vst [vmem:[#allocation2 + $0xe0] sm:$0xff] 0.0
        %263 = vst [vmem:[#allocation2 + $0xe8] sm:$0xff] 0.0
        %264 = vst [vmem:[#allocation2 + $0xf0] sm:$0xff] 0.0
        %265 = vst [vmem:[#allocation2 + $0xf8] sm:$0xff] 0.0
      $region32: #{disc_layer_nhwc.2} parent=27 // pred_fallthru
        _
      %v266 = vld [vmem:[#allocation2] sm:$0xff]
      %v267 = vld [vmem:[#allocation2 + $0x8] sm:$0xff]
      %v268 = vld [vmem:[#allocation2 + $0x10] sm:$0xff]
      %v269 = vld [vmem:[#allocation2 + $0x18] sm:$0xff]
      %v270 = vld [vmem:[#allocation2 + $0x20] sm:$0xff]
      %v271 = vld [vmem:[#allocation2 + $0x28] sm:$0xff]
      %v272 = vld [vmem:[#allocation2 + $0x30] sm:$0xff]
      %v273 = vld [vmem:[#allocation2 + $0x38] sm:$0xff]
      %v274 = vld [vmem:[#allocation2 + $0x40] sm:$0xff]
      %v275 = vld [vmem:[#allocation2 + $0x48] sm:$0xff]
      %v276 = vld [vmem:[#allocation2 + $0x50] sm:$0xff]
      %v277 = vld [vmem:[#allocation2 + $0x58] sm:$0xff]
      %v278 = vld [vmem:[#allocation2 + $0x60] sm:$0xff]
      %v279 = vld [vmem:[#allocation2 + $0x68] sm:$0xff]
      %v280 = vld [vmem:[#allocation2 + $0x70] sm:$0xff]
      %v281 = vld [vmem:[#allocation2 + $0x78] sm:$0xff]
      %v282 = vld [vmem:[#allocation2 + $0x80] sm:$0xff]
      %v283 = vld [vmem:[#allocation2 + $0x88] sm:$0xff]
      %v284 = vld [vmem:[#allocation2 + $0x90] sm:$0xff]
      %v285 = vld [vmem:[#allocation2 + $0x98] sm:$0xff]
      %v286 = vld [vmem:[#allocation2 + $0xa0] sm:$0xff]
      %v287 = vld [vmem:[#allocation2 + $0xa8] sm:$0xff]
      %v288 = vld [vmem:[#allocation2 + $0xb0] sm:$0xff]
      %v289 = vld [vmem:[#allocation2 + $0xb8] sm:$0xff]
      %v290 = vld [vmem:[#allocation2 + $0xc0] sm:$0xff]
      %v291 = vld [vmem:[#allocation2 + $0xc8] sm:$0xff]
      %v292 = vld [vmem:[#allocation2 + $0xd0] sm:$0xff]
      %v293 = vld [vmem:[#allocation2 + $0xd8] sm:$0xff]
      %v294 = vld [vmem:[#allocation2 + $0xe0] sm:$0xff]
      %v295 = vld [vmem:[#allocation2 + $0xe8] sm:$0xff]
      %v296 = vld [vmem:[#allocation2 + $0xf0] sm:$0xff]
      %v297 = vld [vmem:[#allocation2 + $0xf8] sm:$0xff]
      %v298 = vld [vmem:[%s212] sm:$0xf]
      %v299 = vld [vmem:[%s212 + $0x4] sm:$0xf]
      %v300 = vld [vmem:[%s212 + $0x8] sm:$0xf]
      %v301 = vld [vmem:[%s212 + $0xc] sm:$0xf]
      %v302 = vld [vmem:[%s212 + $0x10] sm:$0xf]
      %v303 = vld [vmem:[%s212 + $0x14] sm:$0xf]
      %v304 = vld [vmem:[%s212 + $0x18] sm:$0xf]
      %v305 = vld [vmem:[%s212 + $0x1c] sm:$0xf]
      %v306 = vld [vmem:[%s212 + $0x20] sm:$0xf]
      %v307 = vld [vmem:[%s212 + $0x24] sm:$0xf]
      %v308 = vld [vmem:[%s212 + $0x28] sm:$0xf]
      %v309 = vld [vmem:[%s212 + $0x2c] sm:$0xf]
      %v310 = vld [vmem:[%s212 + $0x30] sm:$0xf]
      %v311 = vld [vmem:[%s212 + $0x34] sm:$0xf]
      %v312 = vld [vmem:[%s212 + $0x38] sm:$0xf]
      %v313 = vld [vmem:[%s212 + $0x3c] sm:$0xf]
      %v314 = vld [vmem:[%s212 + $0x40] sm:$0xf]
      %v315 = vld [vmem:[%s212 + $0x44] sm:$0xf]
      %v316 = vld [vmem:[%s212 + $0x48] sm:$0xf]
      %v317 = vld [vmem:[%s212 + $0x4c] sm:$0xf]
      %v318 = vld [vmem:[%s212 + $0x50] sm:$0xf]
      %v319 = vld [vmem:[%s212 + $0x54] sm:$0xf]
      %v320 = vld [vmem:[%s212 + $0x58] sm:$0xf]
      %v321 = vld [vmem:[%s212 + $0x5c] sm:$0xf]
      %v322 = vld [vmem:[%s212 + $0x60] sm:$0xf]
      %v323 = vld [vmem:[%s212 + $0x64] sm:$0xf]
      %v324 = vld [vmem:[%s212 + $0x68] sm:$0xf]
      %v325 = vld [vmem:[%s212 + $0x6c] sm:$0xf]
      %v326 = vld [vmem:[%s212 + $0x70] sm:$0xf]
      %v327 = vld [vmem:[%s212 + $0x74] sm:$0xf]
      %v328 = vld [vmem:[%s212 + $0x78] sm:$0xf]
      %v329 = vld [vmem:[%s212 + $0x7c] sm:$0xf]
      %v330 = vld [vmem:[%s218] sm:$0xf]
      %v331 = vld [vmem:[%s218 + $0x4] sm:$0xf]
      %v332 = vld [vmem:[%s218 + $0x8] sm:$0xf]
      %v333 = vld [vmem:[%s218 + $0xc] sm:$0xf]
      %v334 = vld [vmem:[%s218 + $0x10] sm:$0xf]
      %v335 = vld [vmem:[%s218 + $0x14] sm:$0xf]
      %v336 = vld [vmem:[%s218 + $0x18] sm:$0xf]
      %v337 = vld [vmem:[%s218 + $0x1c] sm:$0xf]
      %v338 = vld [vmem:[%s218 + $0x20] sm:$0xf]
      %v339 = vld [vmem:[%s218 + $0x24] sm:$0xf]
      %v340 = vld [vmem:[%s218 + $0x28] sm:$0xf]
      %v341 = vld [vmem:[%s218 + $0x2c] sm:$0xf]
      %v342 = vld [vmem:[%s218 + $0x30] sm:$0xf]
      %v343 = vld [vmem:[%s218 + $0x34] sm:$0xf]
      %v344 = vld [vmem:[%s218 + $0x38] sm:$0xf]
      %v345 = vld [vmem:[%s218 + $0x3c] sm:$0xf]
      %v378 = vunpack.c.l.b16 %v298
      %v379 = vunpack.c.l.b16 %v299
      %v380 = vunpack.c.l.b16 %v300
      %v381 = vunpack.c.l.b16 %v301
      %v382 = vunpack.c.l.b16 %v302
      %v383 = vunpack.c.l.b16 %v303
      %v384 = vunpack.c.l.b16 %v304
      %v385 = vunpack.c.l.b16 %v305
      %v386 = vunpack.c.l.b16 %v306
      %v387 = vunpack.c.l.b16 %v307
      %v388 = vunpack.c.l.b16 %v308
      %v389 = vunpack.c.l.b16 %v309
      %v390 = vunpack.c.l.b16 %v310
      %v391 = vunpack.c.l.b16 %v311
      %v392 = vunpack.c.l.b16 %v312
      %v393 = vunpack.c.l.b16 %v313
      %v394 = vunpack.c.l.b16 %v314
      %v395 = vunpack.c.l.b16 %v315
      %v396 = vunpack.c.l.b16 %v316
      %v397 = vunpack.c.l.b16 %v317
      %v398 = vunpack.c.l.b16 %v318
      %v399 = vunpack.c.l.b16 %v319
      %v400 = vunpack.c.l.b16 %v320
      %v401 = vunpack.c.l.b16 %v321
      %v402 = vunpack.c.l.b16 %v322
      %v403 = vunpack.c.l.b16 %v323
      %v404 = vunpack.c.l.b16 %v324
      %v405 = vunpack.c.l.b16 %v325
      %v406 = vunpack.c.l.b16 %v326
      %v407 = vunpack.c.l.b16 %v327
      %v408 = vunpack.c.l.b16 %v328
      %v409 = vunpack.c.l.b16 %v329
      %v410 = vpack.c.b16 %v379, %v378
      %v411 = vpack.c.b16 %v381, %v380
      %v412 = vpack.c.b16 %v383, %v382
      %v413 = vpack.c.b16 %v385, %v384
      %v414 = vpack.c.b16 %v387, %v386
      %v415 = vpack.c.b16 %v389, %v388
      %v416 = vpack.c.b16 %v391, %v390
      %v417 = vpack.c.b16 %v393, %v392
      %v418 = vpack.c.b16 %v395, %v394
      %v419 = vpack.c.b16 %v397, %v396
      %v420 = vpack.c.b16 %v399, %v398
      %v421 = vpack.c.b16 %v401, %v400
      %v422 = vpack.c.b16 %v403, %v402
      %v423 = vpack.c.b16 %v405, %v404
      %v424 = vpack.c.b16 %v407, %v406
      %v425 = vpack.c.b16 %v409, %v408
      %v458 = vunpack.c.l.b16 %v330
      %v459 = vunpack.c.l.b16 %v331
      %v460 = vunpack.c.l.b16 %v332
      %v461 = vunpack.c.l.b16 %v333
      %v462 = vunpack.c.l.b16 %v334
      %v463 = vunpack.c.l.b16 %v335
      %v464 = vunpack.c.l.b16 %v336
      %v465 = vunpack.c.l.b16 %v337
      %v466 = vunpack.c.l.b16 %v338
      %v467 = vunpack.c.l.b16 %v339
      %v468 = vunpack.c.l.b16 %v340
      %v469 = vunpack.c.l.b16 %v341
      %v470 = vunpack.c.l.b16 %v342
      %v471 = vunpack.c.l.b16 %v343
      %v472 = vunpack.c.l.b16 %v344
      %v473 = vunpack.c.l.b16 %v345
      %v474 = vpack.c.b16 %v459, %v458
      %v475 = vpack.c.b16 %v461, %v460
      %v476 = vpack.c.b16 %v463, %v462
      %v477 = vpack.c.b16 %v465, %v464
      %v478 = vpack.c.b16 %v467, %v466
      %v479 = vpack.c.b16 %v469, %v468
      %v480 = vpack.c.b16 %v471, %v470
      %v481 = vpack.c.b16 %v473, %v472
      %490 = vmatpush.bf16.msra.mxu0 %v481
      %491 = vmatpush.bf16.msra.mxu0 %v480
      %492 = vmatpush.bf16.msra.mxu0 %v479
      %493 = vmatpush.bf16.msra.mxu0 %v478
      %494 = vmatpush.bf16.msra.mxu0 %v477
      %495 = vmatpush.bf16.msra.mxu0 %v476
      %496 = vmatpush.bf16.msra.mxu0 %v475
      %497 = vmatpush.bf16.msra.mxu0 %v474
      %498 = vmatmul.bf16.gmra.mxu0 %v410
      %v499 = vpop.f32.mrf.mxu0
      %v500 = vadd.f32 0.0, %v499
      %v501 = vpop.f32.mrf.mxu0
      %v502 = vadd.f32 0.0, %v501
      %503 = vmatmul.bf16.gmra.mxu0 %v411
      %v504 = vpop.f32.mrf.mxu0
      %v505 = vadd.f32 0.0, %v504
      %v506 = vpop.f32.mrf.mxu0
      %v507 = vadd.f32 0.0, %v506
      %508 = vmatmul.bf16.gmra.mxu0 %v412
      %v509 = vpop.f32.mrf.mxu0
      %v510 = vadd.f32 0.0, %v509
      %v511 = vpop.f32.mrf.mxu0
      %v512 = vadd.f32 0.0, %v511
      %513 = vmatmul.bf16.gmra.mxu0 %v413
      %v514 = vpop.f32.mrf.mxu0
      %v515 = vadd.f32 0.0, %v514
      %v516 = vpop.f32.mrf.mxu0
      %v517 = vadd.f32 0.0, %v516
      %518 = vmatmul.bf16.gmra.mxu0 %v414
      %v519 = vpop.f32.mrf.mxu0
      %v520 = vadd.f32 0.0, %v519
      %v521 = vpop.f32.mrf.mxu0
      %v522 = vadd.f32 0.0, %v521
      %523 = vmatmul.bf16.gmra.mxu0 %v415
      %v524 = vpop.f32.mrf.mxu0
      %v525 = vadd.f32 0.0, %v524
      %v526 = vpop.f32.mrf.mxu0
      %v527 = vadd.f32 0.0, %v526
      %528 = vmatmul.bf16.gmra.mxu0 %v416
      %v529 = vpop.f32.mrf.mxu0
      %v530 = vadd.f32 0.0, %v529
      %v531 = vpop.f32.mrf.mxu0
      %v532 = vadd.f32 0.0, %v531
      %533 = vmatmul.bf16.gmra.mxu0 %v417
      %v534 = vpop.f32.mrf.mxu0
      %v535 = vadd.f32 0.0, %v534
      %v536 = vpop.f32.mrf.mxu0
      %v537 = vadd.f32 0.0, %v536
      %538 = vmatmul.bf16.gmra.mxu0 %v418
      %v539 = vpop.f32.mrf.mxu0
      %v540 = vadd.f32 0.0, %v539
      %v541 = vpop.f32.mrf.mxu0
      %v542 = vadd.f32 0.0, %v541
      %543 = vmatmul.bf16.gmra.mxu0 %v419
      %v544 = vpop.f32.mrf.mxu0
      %v545 = vadd.f32 0.0, %v544
      %v546 = vpop.f32.mrf.mxu0
      %v547 = vadd.f32 0.0, %v546
      %548 = vmatmul.bf16.gmra.mxu0 %v420
      %v549 = vpop.f32.mrf.mxu0
      %v550 = vadd.f32 0.0, %v549
      %v551 = vpop.f32.mrf.mxu0
      %v552 = vadd.f32 0.0, %v551
      %553 = vmatmul.bf16.gmra.mxu0 %v421
      %v554 = vpop.f32.mrf.mxu0
      %v555 = vadd.f32 0.0, %v554
      %v556 = vpop.f32.mrf.mxu0
      %v557 = vadd.f32 0.0, %v556
      %558 = vmatmul.bf16.gmra.mxu0 %v422
      %v559 = vpop.f32.mrf.mxu0
      %v560 = vadd.f32 0.0, %v559
      %v561 = vpop.f32.mrf.mxu0
      %v562 = vadd.f32 0.0, %v561
      %563 = vmatmul.bf16.gmra.mxu0 %v423
      %v564 = vpop.f32.mrf.mxu0
      %v565 = vadd.f32 0.0, %v564
      %v566 = vpop.f32.mrf.mxu0
      %v567 = vadd.f32 0.0, %v566
      %568 = vmatmul.bf16.gmra.mxu0 %v424
      %v569 = vpop.f32.mrf.mxu0
      %v570 = vadd.f32 0.0, %v569
      %v571 = vpop.f32.mrf.mxu0
      %v572 = vadd.f32 0.0, %v571
      %573 = vmatmul.bf16.gmra.mxu0 %v425
      %v574 = vpop.f32.mrf.mxu0
      %v575 = vadd.f32 0.0, %v574
      %v576 = vpop.f32.mrf.mxu0
      %v577 = vadd.f32 0.0, %v576
      %578 = vdwg.mxu0
      %v579 = vadd.f32 %v266, %v500
      %v580 = vadd.f32 %v267, %v502
      %v581 = vadd.f32 %v268, %v505
      %v582 = vadd.f32 %v269, %v507
      %v583 = vadd.f32 %v270, %v510
      %v584 = vadd.f32 %v271, %v512
      %v585 = vadd.f32 %v272, %v515
      %v586 = vadd.f32 %v273, %v517
      %v587 = vadd.f32 %v274, %v520
      %v588 = vadd.f32 %v275, %v522
      %v589 = vadd.f32 %v276, %v525
      %v590 = vadd.f32 %v277, %v527
      %v591 = vadd.f32 %v278, %v530
      %v592 = vadd.f32 %v279, %v532
      %v593 = vadd.f32 %v280, %v535
      %v594 = vadd.f32 %v281, %v537
      %v595 = vadd.f32 %v282, %v540
      %v596 = vadd.f32 %v283, %v542
      %v597 = vadd.f32 %v284, %v545
      %v598 = vadd.f32 %v285, %v547
      %v599 = vadd.f32 %v286, %v550
      %v600 = vadd.f32 %v287, %v552
      %v601 = vadd.f32 %v288, %v555
      %v602 = vadd.f32 %v289, %v557
      %v603 = vadd.f32 %v290, %v560
      %v604 = vadd.f32 %v291, %v562
      %v605 = vadd.f32 %v292, %v565
      %v606 = vadd.f32 %v293, %v567
      %v607 = vadd.f32 %v294, %v570
      %v608 = vadd.f32 %v295, %v572
      %v609 = vadd.f32 %v296, %v575
      %v610 = vadd.f32 %v297, %v577
      %611 = vst [vmem:[#allocation2] sm:$0xff] %v579
      %612 = vst [vmem:[#allocation2 + $0x8] sm:$0xff] %v580
      %613 = vst [vmem:[#allocation2 + $0x10] sm:$0xff] %v581
      %614 = vst [vmem:[#allocation2 + $0x18] sm:$0xff] %v582
      %615 = vst [vmem:[#allocation2 + $0x20] sm:$0xff] %v583
      %616 = vst [vmem:[#allocation2 + $0x28] sm:$0xff] %v584
      %617 = vst [vmem:[#allocation2 + $0x30] sm:$0xff] %v585
      %618 = vst [vmem:[#allocation2 + $0x38] sm:$0xff] %v586
      %619 = vst [vmem:[#allocation2 + $0x40] sm:$0xff] %v587
      %620 = vst [vmem:[#allocation2 + $0x48] sm:$0xff] %v588
      %621 = vst [vmem:[#allocation2 + $0x50] sm:$0xff] %v589
      %622 = vst [vmem:[#allocation2 + $0x58] sm:$0xff] %v590
      %623 = vst [vmem:[#allocation2 + $0x60] sm:$0xff] %v591
      %624 = vst [vmem:[#allocation2 + $0x68] sm:$0xff] %v592
      %625 = vst [vmem:[#allocation2 + $0x70] sm:$0xff] %v593
      %626 = vst [vmem:[#allocation2 + $0x78] sm:$0xff] %v594
      %627 = vst [vmem:[#allocation2 + $0x80] sm:$0xff] %v595
      %628 = vst [vmem:[#allocation2 + $0x88] sm:$0xff] %v596
      %629 = vst [vmem:[#allocation2 + $0x90] sm:$0xff] %v597
      %630 = vst [vmem:[#allocation2 + $0x98] sm:$0xff] %v598
      %631 = vst [vmem:[#allocation2 + $0xa0] sm:$0xff] %v599
      %632 = vst [vmem:[#allocation2 + $0xa8] sm:$0xff] %v600
      %633 = vst [vmem:[#allocation2 + $0xb0] sm:$0xff] %v601
      %634 = vst [vmem:[#allocation2 + $0xb8] sm:$0xff] %v602
      %635 = vst [vmem:[#allocation2 + $0xc0] sm:$0xff] %v603
      %636 = vst [vmem:[#allocation2 + $0xc8] sm:$0xff] %v604
      %637 = vst [vmem:[#allocation2 + $0xd0] sm:$0xff] %v605
      %638 = vst [vmem:[#allocation2 + $0xd8] sm:$0xff] %v606
      %639 = vst [vmem:[#allocation2 + $0xe0] sm:$0xff] %v607
      %640 = vst [vmem:[#allocation2 + $0xe8] sm:$0xff] %v608
      %641 = vst [vmem:[#allocation2 + $0xf0] sm:$0xff] %v609
      %642 = vst [vmem:[#allocation2 + $0xf8] sm:$0xff] %v610
      // Predicated region
      $region33: #{disc_layer_nhwc.2} parent=27 // pred_check
        %p643 = pneg %p230
      $region34: #{disc_layer_nhwc.2} parent=27 // pred_check_branch
        %645 = sbr.rel (%p643) target = $region36
      $region35: #{disc_layer_nhwc.2} parent=27 // pred_region
        %v646 = vld [vmem:[#allocation2] sm:$0xff]
        %v647 = vld [vmem:[#allocation2 + $0x8] sm:$0xff]
        %v648 = vld [vmem:[#allocation2 + $0x10] sm:$0xff]
        %v649 = vld [vmem:[#allocation2 + $0x18] sm:$0xff]
        %v650 = vld [vmem:[#allocation2 + $0x20] sm:$0xff]
        %v651 = vld [vmem:[#allocation2 + $0x28] sm:$0xff]
        %v652 = vld [vmem:[#allocation2 + $0x30] sm:$0xff]
        %v653 = vld [vmem:[#allocation2 + $0x38] sm:$0xff]
        %v654 = vld [vmem:[#allocation2 + $0x40] sm:$0xff]
        %v655 = vld [vmem:[#allocation2 + $0x48] sm:$0xff]
        %v656 = vld [vmem:[#allocation2 + $0x50] sm:$0xff]
        %v657 = vld [vmem:[#allocation2 + $0x58] sm:$0xff]
        %v658 = vld [vmem:[#allocation2 + $0x60] sm:$0xff]
        %v659 = vld [vmem:[#allocation2 + $0x68] sm:$0xff]
        %v660 = vld [vmem:[#allocation2 + $0x70] sm:$0xff]
        %v661 = vld [vmem:[#allocation2 + $0x78] sm:$0xff]
        %v662 = vld [vmem:[#allocation2 + $0x80] sm:$0xff]
        %v663 = vld [vmem:[#allocation2 + $0x88] sm:$0xff]
        %v664 = vld [vmem:[#allocation2 + $0x90] sm:$0xff]
        %v665 = vld [vmem:[#allocation2 + $0x98] sm:$0xff]
        %v666 = vld [vmem:[#allocation2 + $0xa0] sm:$0xff]
        %v667 = vld [vmem:[#allocation2 + $0xa8] sm:$0xff]
        %v668 = vld [vmem:[#allocation2 + $0xb0] sm:$0xff]
        %v669 = vld [vmem:[#allocation2 + $0xb8] sm:$0xff]
        %v670 = vld [vmem:[#allocation2 + $0xc0] sm:$0xff]
        %v671 = vld [vmem:[#allocation2 + $0xc8] sm:$0xff]
        %v672 = vld [vmem:[#allocation2 + $0xd0] sm:$0xff]
        %v673 = vld [vmem:[#allocation2 + $0xd8] sm:$0xff]
        %v674 = vld [vmem:[#allocation2 + $0xe0] sm:$0xff]
        %v675 = vld [vmem:[#allocation2 + $0xe8] sm:$0xff]
        %v676 = vld [vmem:[#allocation2 + $0xf0] sm:$0xff]
        %v677 = vld [vmem:[#allocation2 + $0xf8] sm:$0xff]
        %v678 = vpack.c.bf16 %v646, %v646
        %v679 = vpack.c.bf16 %v647, %v647
        %v680 = vpack.c.bf16 %v648, %v648
        %v681 = vpack.c.bf16 %v649, %v649
        %v682 = vpack.c.bf16 %v650, %v650
        %v683 = vpack.c.bf16 %v651, %v651
        %v684 = vpack.c.bf16 %v652, %v652
        %v685 = vpack.c.bf16 %v653, %v653
        %v686 = vpack.c.bf16 %v654, %v654
        %v687 = vpack.c.bf16 %v655, %v655
        %v688 = vpack.c.bf16 %v656, %v656
        %v689 = vpack.c.bf16 %v657, %v657
        %v690 = vpack.c.bf16 %v658, %v658
        %v691 = vpack.c.bf16 %v659, %v659
        %v692 = vpack.c.bf16 %v660, %v660
        %v693 = vpack.c.bf16 %v661, %v661
        %v694 = vpack.c.bf16 %v662, %v662
        %v695 = vpack.c.bf16 %v663, %v663
        %v696 = vpack.c.bf16 %v664, %v664
        %v697 = vpack.c.bf16 %v665, %v665
        %v698 = vpack.c.bf16 %v666, %v666
        %v699 = vpack.c.bf16 %v667, %v667
        %v700 = vpack.c.bf16 %v668, %v668
        %v701 = vpack.c.bf16 %v669, %v669
        %v702 = vpack.c.bf16 %v670, %v670
        %v703 = vpack.c.bf16 %v671, %v671
        %v704 = vpack.c.bf16 %v672, %v672
        %v705 = vpack.c.bf16 %v673, %v673
        %v706 = vpack.c.bf16 %v674, %v674
        %v707 = vpack.c.bf16 %v675, %v675
        %v708 = vpack.c.bf16 %v676, %v676
        %v709 = vpack.c.bf16 %v677, %v677
        %710 = vst [vmem:[%s224] sm:$0xf] %v678
        %711 = vst [vmem:[%s224 + $0x4] sm:$0xf] %v679
        %712 = vst [vmem:[%s224 + $0x8] sm:$0xf] %v680
        %713 = vst [vmem:[%s224 + $0xc] sm:$0xf] %v681
        %714 = vst [vmem:[%s224 + $0x10] sm:$0xf] %v682
        %715 = vst [vmem:[%s224 + $0x14] sm:$0xf] %v683
        %716 = vst [vmem:[%s224 + $0x18] sm:$0xf] %v684
        %717 = vst [vmem:[%s224 + $0x1c] sm:$0xf] %v685
        %718 = vst [vmem:[%s224 + $0x20] sm:$0xf] %v686
        %719 = vst [vmem:[%s224 + $0x24] sm:$0xf] %v687
        %720 = vst [vmem:[%s224 + $0x28] sm:$0xf] %v688
        %721 = vst [vmem:[%s224 + $0x2c] sm:$0xf] %v689
        %722 = vst [vmem:[%s224 + $0x30] sm:$0xf] %v690
        %723 = vst [vmem:[%s224 + $0x34] sm:$0xf] %v691
        %724 = vst [vmem:[%s224 + $0x38] sm:$0xf] %v692
        %725 = vst [vmem:[%s224 + $0x3c] sm:$0xf] %v693
        %726 = vst [vmem:[%s224 + $0x40] sm:$0xf] %v694
        %727 = vst [vmem:[%s224 + $0x44] sm:$0xf] %v695
        %728 = vst [vmem:[%s224 + $0x48] sm:$0xf] %v696
        %729 = vst [vmem:[%s224 + $0x4c] sm:$0xf] %v697
        %730 = vst [vmem:[%s224 + $0x50] sm:$0xf] %v698
        %731 = vst [vmem:[%s224 + $0x54] sm:$0xf] %v699
        %732 = vst [vmem:[%s224 + $0x58] sm:$0xf] %v700
        %733 = vst [vmem:[%s224 + $0x5c] sm:$0xf] %v701
        %734 = vst [vmem:[%s224 + $0x60] sm:$0xf] %v702
        %735 = vst [vmem:[%s224 + $0x64] sm:$0xf] %v703
        %736 = vst [vmem:[%s224 + $0x68] sm:$0xf] %v704
        %737 = vst [vmem:[%s224 + $0x6c] sm:$0xf] %v705
        %738 = vst [vmem:[%s224 + $0x70] sm:$0xf] %v706
        %739 = vst [vmem:[%s224 + $0x74] sm:$0xf] %v707
        %740 = vst [vmem:[%s224 + $0x78] sm:$0xf] %v708
        %741 = vst [vmem:[%s224 + $0x7c] sm:$0xf] %v709
        %v742 = vadd.f32 %v646, %v647
        %v743 = vadd.f32 %v742, %v648
        %v744 = vadd.f32 %v743, %v649
        %v745 = vadd.f32 %v744, %v650
        %v746 = vadd.f32 %v745, %v651
        %v747 = vadd.f32 %v746, %v652
        %v748 = vadd.f32 %v747, %v653
        %v749 = vadd.f32 %v748, %v654
        %v750 = vadd.f32 %v749, %v655
        %v751 = vadd.f32 %v750, %v656
        %v752 = vadd.f32 %v751, %v657
        %v753 = vadd.f32 %v752, %v658
        %v754 = vadd.f32 %v753, %v659
        %v755 = vadd.f32 %v754, %v660
        %v756 = vadd.f32 %v755, %v661
        %v757 = vadd.f32 %v756, %v662
        %v758 = vadd.f32 %v757, %v663
        %v759 = vadd.f32 %v758, %v664
        %v760 = vadd.f32 %v759, %v665
        %v761 = vadd.f32 %v760, %v666
        %v762 = vadd.f32 %v761, %v667
        %v763 = vadd.f32 %v762, %v668
        %v764 = vadd.f32 %v763, %v669
        %v765 = vadd.f32 %v764, %v670
        %v766 = vadd.f32 %v765, %v671
        %v767 = vadd.f32 %v766, %v672
        %v768 = vadd.f32 %v767, %v673
        %v769 = vadd.f32 %v768, %v674
        %v770 = vadd.f32 %v769, %v675
        %v771 = vadd.f32 %v770, %v676
        %v772 = vadd.f32 %v771, %v677
        %v773 = vrot.slane %v772, 4
        %v774 = vadd.f32 %v772, %v773
        %v775 = vrot.slane %v774, 2
        %v776 = vadd.f32 %v774, %v775
        %v777 = vrot.slane %v776, 1
        %v778 = vadd.f32 %v776, %v777
        %v779 = vmul.f32 %v646, %v646
        %v780 = vmul.f32 %v647, %v647
        %v781 = vmul.f32 %v648, %v648
        %v782 = vmul.f32 %v649, %v649
        %v783 = vmul.f32 %v650, %v650
        %v784 = vmul.f32 %v651, %v651
        %v785 = vmul.f32 %v652, %v652
        %v786 = vmul.f32 %v653, %v653
        %v787 = vmul.f32 %v654, %v654
        %v788 = vmul.f32 %v655, %v655
        %v789 = vmul.f32 %v656, %v656
        %v790 = vmul.f32 %v657, %v657
        %v791 = vmul.f32 %v658, %v658
        %v792 = vmul.f32 %v659, %v659
        %v793 = vmul.f32 %v660, %v660
        %v794 = vmul.f32 %v661, %v661
        %v795 = vmul.f32 %v662, %v662
        %v796 = vmul.f32 %v663, %v663
        %v797 = vmul.f32 %v664, %v664
        %v798 = vmul.f32 %v665, %v665
        %v799 = vmul.f32 %v666, %v666
        %v800 = vmul.f32 %v667, %v667
        %v801 = vmul.f32 %v668, %v668
        %v802 = vmul.f32 %v669, %v669
        %v803 = vmul.f32 %v670, %v670
        %v804 = vmul.f32 %v671, %v671
        %v805 = vmul.f32 %v672, %v672
        %v806 = vmul.f32 %v673, %v673
        %v807 = vmul.f32 %v674, %v674
        %v808 = vmul.f32 %v675, %v675
        %v809 = vmul.f32 %v676, %v676
        %v810 = vmul.f32 %v677, %v677
        %v811 = vadd.f32 %v779, %v780
        %v812 = vadd.f32 %v811, %v781
        %v813 = vadd.f32 %v812, %v782
        %v814 = vadd.f32 %v813, %v783
        %v815 = vadd.f32 %v814, %v784
        %v816 = vadd.f32 %v815, %v785
        %v817 = vadd.f32 %v816, %v786
        %v818 = vadd.f32 %v817, %v787
        %v819 = vadd.f32 %v818, %v788
        %v820 = vadd.f32 %v819, %v789
        %v821 = vadd.f32 %v820, %v790
        %v822 = vadd.f32 %v821, %v791
        %v823 = vadd.f32 %v822, %v792
        %v824 = vadd.f32 %v823, %v793
        %v825 = vadd.f32 %v824, %v794
        %v826 = vadd.f32 %v825, %v795
        %v827 = vadd.f32 %v826, %v796
        %v828 = vadd.f32 %v827, %v797
        %v829 = vadd.f32 %v828, %v798
        %v830 = vadd.f32 %v829, %v799
        %v831 = vadd.f32 %v830, %v800
        %v832 = vadd.f32 %v831, %v801
        %v833 = vadd.f32 %v832, %v802
        %v834 = vadd.f32 %v833, %v803
        %v835 = vadd.f32 %v834, %v804
        %v836 = vadd.f32 %v835, %v805
        %v837 = vadd.f32 %v836, %v806
        %v838 = vadd.f32 %v837, %v807
        %v839 = vadd.f32 %v838, %v808
        %v840 = vadd.f32 %v839, %v809
        %v841 = vadd.f32 %v840, %v810
        %v842 = vrot.slane %v841, 4
        %v843 = vadd.f32 %v841, %v842
        %v844 = vrot.slane %v843, 2
        %v845 = vadd.f32 %v843, %v844
        %v846 = vrot.slane %v845, 1
        %v847 = vadd.f32 %v845, %v846
        %vm848 = vcmask 1040384
        %v849 = vsel %vm848, %v778, %v847
        %850 = vst [vmem:[%s229] sm:$0x3] %v849
      $region36: #{disc_layer_nhwc.2} parent=27 // pred_fallthru
        _
      %s851 = smul.u32 32, %s19
      %p852 = scmp.lt.s32.totalorder %s851, 63
      %s853 = scalar_select %p852, %s851, 63
      %s854 = smul.addr %s853, 4
      %s855 = scalar_lea.vmem %s2, %s854
      %p856 = scmp.lt.s32.totalorder %s19, 1
      %s857 = scalar_select %p856, %s19, 1
      %s858 = smul.addr %s857, 2
      %s859 = scalar_lea.vmem %s3, %s858
      // Predicated region
      $region37: #{disc_layer_nhwc.2} parent=27 // pred_check
        %p860 = pneg %p99
      $region38: #{disc_layer_nhwc.2} parent=27 // pred_check_branch
        %862 = sbr.rel (%p860) target = $region40
      $region39: #{disc_layer_nhwc.2} parent=27 // pred_region
        %s863 = smul.u32 32, %s19
      $region40: #{disc_layer_nhwc.2} parent=27 // pred_fallthru
        _
      // Predicated region
      $region41: #{disc_layer_nhwc.2} parent=27 // pred_check
        %p864 = pneg %p125
      $region42: #{disc_layer_nhwc.2} parent=27 // pred_check_branch
        %866 = sbr.rel (%p864) target = $region44
      $region43: #{disc_layer_nhwc.2} parent=27 // pred_region
        _
      $region44: #{disc_layer_nhwc.2} parent=27 // pred_fallthru
        _
    $region28: #{disc_layer_nhwc.2} parent=5 // pred_fallthru
      _
    %p867 = scmp.le.s32.totalorder 2, %s10
    // Predicated region
    $region45: #{disc_layer_nhwc.2} parent=5 // pred_check
      %p868 = pneg %p867
    $region46: #{disc_layer_nhwc.2} parent=5 // pred_check_branch
      %870 = sbr.rel (%p868) target = $region48
    $region47: #{disc_layer_nhwc.2} parent=5 // pred_region
      %s871 = ssub.s32 %s10, 2
      // Predicated region
      $region49: #{disc_layer_nhwc.2} parent=47 // pred_check
        %p872 = pneg %p105
      $region50: #{disc_layer_nhwc.2} parent=47 // pred_check_branch
        %874 = sbr.rel (%p872) target = $region52
      $region51: #{disc_layer_nhwc.2} parent=47 // pred_region
        %s875 = smul.u32 32, %s21
        %p876 = scmp.lt.s32.totalorder %s875, 63
        %s877 = scalar_select %p876, %s875, 63
        %s878 = smul.addr %s877, 4
        %s879 = scalar_lea.vmem %s2, %s878
      $region52: #{disc_layer_nhwc.2} parent=47 // pred_fallthru
        _
      // Predicated region
      $region53: #{disc_layer_nhwc.2} parent=47 // pred_check
        %p880 = pneg %p131
      $region54: #{disc_layer_nhwc.2} parent=47 // pred_check_branch
        %882 = sbr.rel (%p880) target = $region56
      $region55: #{disc_layer_nhwc.2} parent=47 // pred_region
        %p883 = scmp.lt.s32.totalorder %s21, 1
        %s884 = scalar_select %p883, %s21, 1
        %s885 = smul.addr %s884, 2
        %s886 = scalar_lea.vmem %s3, %s885
      $region56: #{disc_layer_nhwc.2} parent=47 // pred_fallthru
        _
    $region48: #{disc_layer_nhwc.2} parent=5 // pred_fallthru
      _
  $region6: #{disc_layer_nhwc.2} parent=0 // loop_footer
    %s14 = sadd.s32 1, %s10
  $region7: #{disc_layer_nhwc.2} parent=0 // loop_footer_branch
    %9 = sbr.rel target = $region3
  $region8: #{disc_layer_nhwc.2} parent=0 // loop_exit
    _

</llo_original>
